<compile_context>
chip_gen: v6e
topology: v6e:2x2x1
jax: 0.10.0
libtpu: 0.0.40
codegen_flags: <defaults>
</compile_context>

<pallas_src>
import jax
import jax.numpy as jnp
from jax import lax
from jax.experimental import pallas as pl
from jax.experimental.pallas import tpu as pltpu  # noqa: F401  (TPU-specific params if needed later)

HID1, HID2, HID3, HID_DEC, N_CLASSES = 1024, 256, 12, 512, 2
BN_EPS = 1e-5


def _round_up(n, m):
    return ((n + m - 1) // m) * m


HID3_PAD = _round_up(HID3, 128)                     # 128: z padded to a full lane tile
ZCAT_W = _round_up(HID_DEC + N_CLASSES, 128)        # 640: [Wd1 | Wc | pad]
CLS_PAD = ZCAT_W - HID_DEC                          # 128: classifier region width

# Static, 128-aligned offsets of each small parameter vector inside the packed buffer.
VEC_B1 = 0
VEC_G1 = VEC_B1 + HID1          # 1024
VEC_BE1 = VEC_G1 + HID1         # 2048
VEC_B2 = VEC_BE1 + HID1         # 3072
VEC_G2 = VEC_B2 + HID2          # 3328
VEC_BE2 = VEC_G2 + HID2         # 3584
VEC_B3 = VEC_BE2 + HID2         # 3840
VEC_BZ = VEC_B3 + HID3_PAD      # 3968
VEC_BD2 = VEC_BZ + ZCAT_W       # 4608  (+ xp_w = total width)


def sma_kernel(
    x_ref,
    w1_ref, w2_ref, w3_ref, wz_ref, wd2_ref,   # bf16 weights (w3/wz/wd2 zero-padded)
    vec_ref,                                    # packed f32 biases / BN gamma / BN beta
    out_ref,                                    # (B, xp_w + 128 + 128): [x_pred | z | y]
):
    x = x_ref[...]
    xp_w = wd2_ref.shape[1]                     # round_up(in_dims, 128), static

    def vec(off, width):
        return vec_ref[:, off:off + width]      # static, 128-aligned slice

    def mm(a_f32, w_ref, bias_f32):
        # bf16 operands, f32 accumulation on the MXU; bias added in f32.
        return (
            jnp.dot(a_f32.astype(jnp.bfloat16), w_ref[...],
                    preferred_element_type=jnp.float32)
            + bias_f32
        )

    def bn(h, gamma, beta):
        # Two-pass batch statistics (biased variance, like PyTorch training BN1d).
        mu = jnp.mean(h, axis=0, keepdims=True)
        d = h - mu
        var = jnp.mean(d * d, axis=0, keepdims=True)
        return d * (lax.rsqrt(var + BN_EPS) * gamma) + beta

    # ---- encoder layer 1: Linear -> ReLU -> BatchNorm1d (batch stats) ----
    h1 = bn(jnp.maximum(mm(x, w1_ref, vec(VEC_B1, HID1)), 0.0),
            vec(VEC_G1, HID1), vec(VEC_BE1, HID1))

    # ---- encoder layer 2: Linear -> ReLU -> BatchNorm1d (batch stats) ----
    h2 = bn(jnp.maximum(mm(h1, w2_ref, vec(VEC_B2, HID2)), 0.0),
            vec(VEC_G2, HID2), vec(VEC_BE2, HID2))

    # ---- encoder layer 3: Linear -> ReLU  => z (padded to 128 lanes; pad cols are 0) ----
    z_pad = jnp.maximum(mm(h2, w3_ref, vec(VEC_B3, HID3_PAD)), 0.0)

    # ---- fused decoder layer 1 + classifier head (both consume z, K=128 padded) ----
    hz = mm(z_pad, wz_ref, vec(VEC_BZ, ZCAT_W))           # (B, 640)
    hd = jnp.maximum(hz[:, :HID_DEC], 0.0)                # decoder hidden (B, 512)
    # Exact sigmoid over the aligned 128-lane classifier region (cols 512:640);
    # pad lanes come out as sigmoid(0)=0.5 — garbage, never read by the wrapper.
    y_pad = 1.0 / (1.0 + jnp.exp(-hz[:, HID_DEC:HID_DEC + CLS_PAD]))

    # ---- decoder layer 2: Linear  => x_pred (padded cols are exactly 0) ----
    x_pred_pad = mm(hd, wd2_ref, vec(VEC_BD2, xp_w))      # (B, xp_w)

    # ---- three aligned, lane-dense sliced stores (no concatenate, no zero fill) ----
    out_ref[:, :xp_w] = x_pred_pad
    out_ref[:, xp_w:xp_w + HID3_PAD] = z_pad
    out_ref[:, xp_w + HID3_PAD:xp_w + HID3_PAD + CLS_PAD] = y_pad


def _full_spec(shape):
    nd = len(shape)
    return pl.BlockSpec(shape, lambda: (0,) * nd)  # rank bound per-spec (no late binding)


@jax.jit
def sma_forward(x, prepared_params):
    """Fused SMA forward. x: (B, in_dims) f32. Returns (x_pred, z, y)."""
    B, in_dims = x.shape
    xp_w = _round_up(in_dims, 128)
    out_w = xp_w + HID3_PAD + CLS_PAD
    args = (x,) + tuple(prepared_params)

    slab = pl.pallas_call(
        sma_kernel,
        out_shape=jax.ShapeDtypeStruct((B, out_w), jnp.float32),
        in_specs=[_full_spec(a.shape) for a in args],
        out_specs=_full_spec((B, out_w)),
    )(*args)

    x_pred = slab[:, :in_dims]
    z = slab[:, xp_w:xp_w + HID3]
    y = slab[:, xp_w + HID3_PAD:xp_w + HID3_PAD + N_CLASSES]
    return x_pred, z, y


def init_params(key, in_dims):
    """PyTorch-style init. Linear weights stored (fan_in, fan_out); biases as (1, N)."""
    def linear(key, fan_in, fan_out):
        kw, kb = jax.random.split(key)
        bound = 1.0 / jnp.sqrt(float(fan_in))
        w = jax.random.uniform(kw, (fan_in, fan_out), jnp.float32, -bound, bound)
        b = jax.random.uniform(kb, (1, fan_out), jnp.float32, -bound, bound)
        return w, b

    keys = jax.random.split(key, 6)
    w1, b1 = linear(keys[0], in_dims, HID1)
    w2, b2 = linear(keys[1], HID1, HID2)
    w3, b3 = linear(keys[2], HID2, HID3)
    wd1, bd1 = linear(keys[3], HID3, HID_DEC)
    wd2, bd2 = linear(keys[4], HID_DEC, in_dims)
    wc, bc = linear(keys[5], HID3, N_CLASSES)

    g1 = jnp.ones((1, HID1), jnp.float32)
    be1 = jnp.zeros((1, HID1), jnp.float32)
    g2 = jnp.ones((1, HID2), jnp.float32)
    be2 = jnp.zeros((1, HID2), jnp.float32)

    return (w1, b1, g1, be1, w2, b2, g2, be2, w3, b3,
            wd1, bd1, wd2, bd2, wc, bc)


def prepare_params(params, in_dims):
    """One-time parameter prep: bf16 weights, zero-pad w3/wz/wd2 to lane multiples,
    pack all (1, N) vectors into a single lane-padded f32 buffer."""
    (w1, b1, g1, be1, w2, b2, g2, be2, w3, b3,
     wd1, bd1, wd2, bd2, wc, bc) = params

    xp_w = _round_up(in_dims, 128)

    # z padded to 128 lanes: extra weight cols / bias entries are zero (ReLU(0)=0).
    w3p = jnp.zeros((HID2, HID3_PAD), jnp.float32).at[:, :HID3].set(w3)
    b3p = jnp.zeros((1, HID3_PAD), jnp.float32).at[:, :HID3].set(b3)

    # Fused [Wd1 | Wc | pad] weight consuming z_pad: (128, 640), zero pad rows/cols.
    wz = jnp.zeros((HID3_PAD, ZCAT_W), jnp.float32)
    wz = wz.at[:HID3, :HID_DEC].set(wd1)
    wz = wz.at[:HID3, HID_DEC:HID_DEC + N_CLASSES].set(wc)
    bz = jnp.zeros((1, ZCAT_W), jnp.float32)
    bz = bz.at[:, :HID_DEC].set(bd1)
    bz = bz.at[:, HID_DEC:HID_DEC + N_CLASSES].set(bc)

    # x_pred padded to a 128-lane multiple: extra cols of weight and bias are zero.
    wd2p = jnp.zeros((HID_DEC, xp_w), jnp.float32).at[:, :in_dims].set(wd2)
    bd2p = jnp.zeros((1, xp_w), jnp.float32).at[:, :in_dims].set(bd2)

    # Pack the nine small vectors; every segment starts at a 128-lane multiple
    # (offsets VEC_* above).
    vec = jnp.concatenate([b1, g1, be1, b2, g2, be2, b3p, bz, bd2p], axis=1)

    bf16 = lambda w: w.astype(jnp.bfloat16)
    return (bf16(w1), bf16(w2), bf16(w3p), bf16(wz), bf16(wd2p), vec)


def sma_forward_ref(x, params):
    """Pure-JAX reference of the module's forward, mirroring the kernel's bf16
    matmul operands (f32 accumulation) so it validates the kernel math exactly."""
    (w1, b1, g1, be1, w2, b2, g2, be2, w3, b3,
     wd1, bd1, wd2, bd2, wc, bc) = params

    def mm(a, w, b):
        return jnp.dot(a.astype(jnp.bfloat16), w.astype(jnp.bfloat16),
                       preferred_element_type=jnp.float32) + b

    def bn(h, g, be):
        mu = jnp.mean(h, axis=0, keepdims=True)
        var = jnp.mean((h - mu) ** 2, axis=0, keepdims=True)  # biased, two-pass
        return (h - mu) / jnp.sqrt(var + BN_EPS) * g + be

    h1 = bn(jnp.maximum(mm(x, w1, b1), 0.0), g1, be1)
    h2 = bn(jnp.maximum(mm(h1, w2, b2), 0.0), g2, be2)
    z = jnp.maximum(mm(h2, w3, b3), 0.0)
    y = jax.nn.sigmoid(mm(z, wc, bc))
    x_pred = mm(jnp.maximum(mm(z, wd1, bd1), 0.0), wd2, bd2)
    return x_pred, z, y


if __name__ == "__main__":
    IN_DIMS = 64
    BATCH = 8
    NUM_VIEWS = 2  # stored by the PyTorch module but unused in forward()

    key = jax.random.PRNGKey(0)
    kx, kp = jax.random.split(key)
    x = jax.random.normal(kx, (BATCH, IN_DIMS), jnp.float32)
    params = init_params(kp, IN_DIMS)
    prepared = prepare_params(params, IN_DIMS)

    x_pred, z, y = jax.block_until_ready(sma_forward(x, prepared))

    # Validate against the pure-JAX reference.
    xr, zr, yr = sma_forward_ref(x, params)
    assert x_pred.shape == (BATCH, IN_DIMS)
    assert z.shape == (BATCH, HID3)
    assert y.shape == (BATCH, N_CLASSES)
    assert jnp.allclose(x_pred, xr, atol=5e-3, rtol=5e-3)
    assert jnp.allclose(z, zr, atol=5e-3, rtol=5e-3)
    assert jnp.allclose(y, yr, atol=5e-3, rtol=5e-3)

    print("KERNEL_OK")
</pallas_src>

<mosaic_0001>
module attributes {stable_mosaic.version = 11 : i64} {
  func.func @sma_kernel(%arg0: memref<8x64xf32, #tpu.memory_space<vmem>>, %arg1: memref<64x1024xbf16, #tpu.memory_space<vmem>>, %arg2: memref<1024x256xbf16, #tpu.memory_space<vmem>>, %arg3: memref<256x128xbf16, #tpu.memory_space<vmem>>, %arg4: memref<128x640xbf16, #tpu.memory_space<vmem>>, %arg5: memref<512x128xbf16, #tpu.memory_space<vmem>>, %arg6: memref<1x4736xf32, #tpu.memory_space<vmem>>, %arg7: memref<8x384xf32, #tpu.memory_space<vmem>>) attributes {dimension_semantics = [], scalar_prefetch = 0 : i64, scratch_operands = 0 : i64, tpu.core_type = #tpu.core_type<tc>} {
    %c0 = arith.constant 0 : index
    %c0_0 = arith.constant 0 : index
    %0 = vector.load %arg0[%c0, %c0_0] : memref<8x64xf32, #tpu.memory_space<vmem>>, vector<8x64xf32>
    %c0_1 = arith.constant 0 : index
    %c0_2 = arith.constant 0 : index
    %1 = vector.load %arg6[%c0_1, %c0_2] : memref<1x4736xf32, #tpu.memory_space<vmem>>, vector<1x1024xf32>
    %2 = arith.truncf %0 : vector<8x64xf32> to vector<8x64xbf16>
    %c0_3 = arith.constant 0 : index
    %c0_4 = arith.constant 0 : index
    %3 = vector.load %arg1[%c0_3, %c0_4] : memref<64x1024xbf16, #tpu.memory_space<vmem>>, vector<64x1024xbf16>
    %cst = arith.constant dense<0.000000e+00> : vector<8x1024xf32>
    %4 = tpu.matmul %2, %3, %cst {dimension_numbers = #tpu.dot_dimension_numbers<[1], [0], [0], [1], [0, 0, 1, 1], [], []>} : vector<8x64xbf16>, vector<64x1024xbf16>, vector<8x1024xf32> -> vector<8x1024xf32>
    %5 = vector.broadcast %1 : vector<1x1024xf32> to vector<8x1024xf32>
    %6 = arith.addf %4, %5 : vector<8x1024xf32>
    %cst_5 = arith.constant 0.000000e+00 : f32
    %7 = vector.broadcast %cst_5 : f32 to vector<8x1024xf32>
    %8 = arith.maximumf %6, %7 : vector<8x1024xf32>
    %c0_6 = arith.constant 0 : index
    %c1024 = arith.constant 1024 : index
    %9 = vector.load %arg6[%c0_6, %c1024] : memref<1x4736xf32, #tpu.memory_space<vmem>>, vector<1x1024xf32>
    %c0_7 = arith.constant 0 : index
    %c2048 = arith.constant 2048 : index
    %10 = vector.load %arg6[%c0_7, %c2048] : memref<1x4736xf32, #tpu.memory_space<vmem>>, vector<1x1024xf32>
    %cst_8 = arith.constant dense<0.000000e+00> : vector<1024xf32>
    %11 = vector.multi_reduction <add>, %8, %cst_8 [0] : vector<8x1024xf32> to vector<1024xf32>
    %12 = vector.shape_cast %11 : vector<1024xf32> to vector<1x1024xf32>
    %cst_9 = arith.constant 8.000000e+00 : f32
    %13 = vector.broadcast %cst_9 : f32 to vector<1x1024xf32>
    %14 = arith.divf %12, %13 : vector<1x1024xf32>
    %15 = vector.broadcast %14 : vector<1x1024xf32> to vector<8x1024xf32>
    %16 = arith.subf %8, %15 : vector<8x1024xf32>
    %17 = arith.mulf %16, %16 : vector<8x1024xf32>
    %cst_10 = arith.constant dense<0.000000e+00> : vector<1024xf32>
    %18 = vector.multi_reduction <add>, %17, %cst_10 [0] : vector<8x1024xf32> to vector<1024xf32>
    %19 = vector.shape_cast %18 : vector<1024xf32> to vector<1x1024xf32>
    %cst_11 = arith.constant 8.000000e+00 : f32
    %20 = vector.broadcast %cst_11 : f32 to vector<1x1024xf32>
    %21 = arith.divf %19, %20 : vector<1x1024xf32>
    %cst_12 = arith.constant 9.99999974E-6 : f32
    %22 = vector.broadcast %cst_12 : f32 to vector<1x1024xf32>
    %23 = arith.addf %21, %22 : vector<1x1024xf32>
    %24 = math.rsqrt %23 : vector<1x1024xf32>
    %25 = arith.mulf %24, %9 : vector<1x1024xf32>
    %26 = vector.broadcast %25 : vector<1x1024xf32> to vector<8x1024xf32>
    %27 = arith.mulf %16, %26 : vector<8x1024xf32>
    %28 = vector.broadcast %10 : vector<1x1024xf32> to vector<8x1024xf32>
    %29 = arith.addf %27, %28 : vector<8x1024xf32>
    %c0_13 = arith.constant 0 : index
    %c3072 = arith.constant 3072 : index
    %30 = vector.load %arg6[%c0_13, %c3072] : memref<1x4736xf32, #tpu.memory_space<vmem>>, vector<1x256xf32>
    %31 = arith.truncf %29 : vector<8x1024xf32> to vector<8x1024xbf16>
    %c0_14 = arith.constant 0 : index
    %c0_15 = arith.constant 0 : index
    %32 = vector.load %arg2[%c0_14, %c0_15] : memref<1024x256xbf16, #tpu.memory_space<vmem>>, vector<1024x256xbf16>
    %cst_16 = arith.constant dense<0.000000e+00> : vector<8x256xf32>
    %33 = tpu.matmul %31, %32, %cst_16 {dimension_numbers = #tpu.dot_dimension_numbers<[1], [0], [0], [1], [0, 0, 1, 1], [], []>} : vector<8x1024xbf16>, vector<1024x256xbf16>, vector<8x256xf32> -> vector<8x256xf32>
    %34 = vector.broadcast %30 : vector<1x256xf32> to vector<8x256xf32>
    %35 = arith.addf %33, %34 : vector<8x256xf32>
    %cst_17 = arith.constant 0.000000e+00 : f32
    %36 = vector.broadcast %cst_17 : f32 to vector<8x256xf32>
    %37 = arith.maximumf %35, %36 : vector<8x256xf32>
    %c0_18 = arith.constant 0 : index
    %c3328 = arith.constant 3328 : index
    %38 = vector.load %arg6[%c0_18, %c3328] : memref<1x4736xf32, #tpu.memory_space<vmem>>, vector<1x256xf32>
    %c0_19 = arith.constant 0 : index
    %c3584 = arith.constant 3584 : index
    %39 = vector.load %arg6[%c0_19, %c3584] : memref<1x4736xf32, #tpu.memory_space<vmem>>, vector<1x256xf32>
    %cst_20 = arith.constant dense<0.000000e+00> : vector<256xf32>
    %40 = vector.multi_reduction <add>, %37, %cst_20 [0] : vector<8x256xf32> to vector<256xf32>
    %41 = vector.shape_cast %40 : vector<256xf32> to vector<1x256xf32>
    %cst_21 = arith.constant 8.000000e+00 : f32
    %42 = vector.broadcast %cst_21 : f32 to vector<1x256xf32>
    %43 = arith.divf %41, %42 : vector<1x256xf32>
    %44 = vector.broadcast %43 : vector<1x256xf32> to vector<8x256xf32>
    %45 = arith.subf %37, %44 : vector<8x256xf32>
    %46 = arith.mulf %45, %45 : vector<8x256xf32>
    %cst_22 = arith.constant dense<0.000000e+00> : vector<256xf32>
    %47 = vector.multi_reduction <add>, %46, %cst_22 [0] : vector<8x256xf32> to vector<256xf32>
    %48 = vector.shape_cast %47 : vector<256xf32> to vector<1x256xf32>
    %cst_23 = arith.constant 8.000000e+00 : f32
    %49 = vector.broadcast %cst_23 : f32 to vector<1x256xf32>
    %50 = arith.divf %48, %49 : vector<1x256xf32>
    %cst_24 = arith.constant 9.99999974E-6 : f32
    %51 = vector.broadcast %cst_24 : f32 to vector<1x256xf32>
    %52 = arith.addf %50, %51 : vector<1x256xf32>
    %53 = math.rsqrt %52 : vector<1x256xf32>
    %54 = arith.mulf %53, %38 : vector<1x256xf32>
    %55 = vector.broadcast %54 : vector<1x256xf32> to vector<8x256xf32>
    %56 = arith.mulf %45, %55 : vector<8x256xf32>
    %57 = vector.broadcast %39 : vector<1x256xf32> to vector<8x256xf32>
    %58 = arith.addf %56, %57 : vector<8x256xf32>
    %c0_25 = arith.constant 0 : index
    %c3840 = arith.constant 3840 : index
    %59 = vector.load %arg6[%c0_25, %c3840] : memref<1x4736xf32, #tpu.memory_space<vmem>>, vector<1x128xf32>
    %60 = arith.truncf %58 : vector<8x256xf32> to vector<8x256xbf16>
    %c0_26 = arith.constant 0 : index
    %c0_27 = arith.constant 0 : index
    %61 = vector.load %arg3[%c0_26, %c0_27] : memref<256x128xbf16, #tpu.memory_space<vmem>>, vector<256x128xbf16>
    %cst_28 = arith.constant dense<0.000000e+00> : vector<8x128xf32>
    %62 = tpu.matmul %60, %61, %cst_28 {dimension_numbers = #tpu.dot_dimension_numbers<[1], [0], [0], [1], [0, 0, 1, 1], [], []>} : vector<8x256xbf16>, vector<256x128xbf16>, vector<8x128xf32> -> vector<8x128xf32>
    %63 = vector.broadcast %59 : vector<1x128xf32> to vector<8x128xf32>
    %64 = arith.addf %62, %63 : vector<8x128xf32>
    %cst_29 = arith.constant 0.000000e+00 : f32
    %65 = vector.broadcast %cst_29 : f32 to vector<8x128xf32>
    %66 = arith.maximumf %64, %65 : vector<8x128xf32>
    %c0_30 = arith.constant 0 : index
    %c3968 = arith.constant 3968 : index
    %67 = vector.load %arg6[%c0_30, %c3968] : memref<1x4736xf32, #tpu.memory_space<vmem>>, vector<1x640xf32>
    %68 = arith.truncf %66 : vector<8x128xf32> to vector<8x128xbf16>
    %c0_31 = arith.constant 0 : index
    %c0_32 = arith.constant 0 : index
    %69 = vector.load %arg4[%c0_31, %c0_32] : memref<128x640xbf16, #tpu.memory_space<vmem>>, vector<128x640xbf16>
    %cst_33 = arith.constant dense<0.000000e+00> : vector<8x640xf32>
    %70 = tpu.matmul %68, %69, %cst_33 {dimension_numbers = #tpu.dot_dimension_numbers<[1], [0], [0], [1], [0, 0, 1, 1], [], []>} : vector<8x128xbf16>, vector<128x640xbf16>, vector<8x640xf32> -> vector<8x640xf32>
    %71 = vector.broadcast %67 : vector<1x640xf32> to vector<8x640xf32>
    %72 = arith.addf %70, %71 : vector<8x640xf32>
    %73 = vector.extract_strided_slice %72 {offsets = [0, 0], sizes = [8, 512], strides = [1, 1]} : vector<8x640xf32> to vector<8x512xf32>
    %cst_34 = arith.constant 0.000000e+00 : f32
    %74 = vector.broadcast %cst_34 : f32 to vector<8x512xf32>
    %75 = arith.maximumf %73, %74 : vector<8x512xf32>
    %76 = vector.extract_strided_slice %72 {offsets = [0, 512], sizes = [8, 128], strides = [1, 1]} : vector<8x640xf32> to vector<8x128xf32>
    %cst_35 = arith.constant 0.000000e+00 : f32
    %77 = vector.broadcast %cst_35 : f32 to vector<8x128xf32>
    %78 = arith.subf %77, %76 : vector<8x128xf32>
    %79 = math.exp %78 : vector<8x128xf32>
    %cst_36 = arith.constant 1.000000e+00 : f32
    %80 = vector.broadcast %cst_36 : f32 to vector<8x128xf32>
    %81 = arith.addf %80, %79 : vector<8x128xf32>
    %cst_37 = arith.constant 1.000000e+00 : f32
    %82 = vector.broadcast %cst_37 : f32 to vector<8x128xf32>
    %83 = arith.divf %82, %81 : vector<8x128xf32>
    %c0_38 = arith.constant 0 : index
    %c4608 = arith.constant 4608 : index
    %84 = vector.load %arg6[%c0_38, %c4608] : memref<1x4736xf32, #tpu.memory_space<vmem>>, vector<1x128xf32>
    %85 = arith.truncf %75 : vector<8x512xf32> to vector<8x512xbf16>
    %c0_39 = arith.constant 0 : index
    %c0_40 = arith.constant 0 : index
    %86 = vector.load %arg5[%c0_39, %c0_40] : memref<512x128xbf16, #tpu.memory_space<vmem>>, vector<512x128xbf16>
    %cst_41 = arith.constant dense<0.000000e+00> : vector<8x128xf32>
    %87 = tpu.matmul %85, %86, %cst_41 {dimension_numbers = #tpu.dot_dimension_numbers<[1], [0], [0], [1], [0, 0, 1, 1], [], []>} : vector<8x512xbf16>, vector<512x128xbf16>, vector<8x128xf32> -> vector<8x128xf32>
    %88 = vector.broadcast %84 : vector<1x128xf32> to vector<8x128xf32>
    %89 = arith.addf %87, %88 : vector<8x128xf32>
    %c0_42 = arith.constant 0 : index
    %c0_43 = arith.constant 0 : index
    %90 = vector.load %arg7[%c0_42, %c0_43] : memref<8x384xf32, #tpu.memory_space<vmem>>, vector<8x128xf32>
    tpu.vector_store %arg7[%c0_42, %c0_43], %89 {strides = array<i32>} : memref<8x384xf32, #tpu.memory_space<vmem>>, vector<8x128xf32>,
    %c0_44 = arith.constant 0 : index
    %c128 = arith.constant 128 : index
    %91 = vector.load %arg7[%c0_44, %c128] : memref<8x384xf32, #tpu.memory_space<vmem>>, vector<8x128xf32>
    tpu.vector_store %arg7[%c0_44, %c128], %66 {strides = array<i32>} : memref<8x384xf32, #tpu.memory_space<vmem>>, vector<8x128xf32>,
    %c0_45 = arith.constant 0 : index
    %c256 = arith.constant 256 : index
    %92 = vector.load %arg7[%c0_45, %c256] : memref<8x384xf32, #tpu.memory_space<vmem>>, vector<8x128xf32>
    tpu.vector_store %arg7[%c0_45, %c256], %83 {strides = array<i32>} : memref<8x384xf32, #tpu.memory_space<vmem>>, vector<8x128xf32>,
    return
  }
}

</mosaic_0001>

<llo_original>
// kernel: sma_forward.1
$region0: #{sma_forward.1}
  #allocation0 [shape = 'u32[]', space=smem, size = 0x4, offset = 0x4, fixed_abs, tag = 'smem constant byte address 0x4 - core index']
  #allocation1 [shape = 'u32[144,128]{1,0:T(1,128)}', space=vmem, size = 0x12000, scoped, tag = 'internal scratch']
  %s0 = inlined_call_operand.hbm [shape: f32[8,64], index: 0, kind: input, shape index: {}]
  %s1 = inlined_call_operand.hbm [shape: bf16[64,1024], index: 1, kind: input, shape index: {}]
  %s2 = inlined_call_operand.hbm [shape: bf16[1024,256], index: 2, kind: input, shape index: {}]
  %s3 = inlined_call_operand.hbm [shape: bf16[256,128], index: 3, kind: input, shape index: {}]
  %s4 = inlined_call_operand.hbm [shape: bf16[128,640], index: 4, kind: input, shape index: {}]
  %s5 = inlined_call_operand.hbm [shape: bf16[512,128], index: 5, kind: input, shape index: {}]
  %s6 = inlined_call_operand.hbm [shape: f32[1,4736], index: 6, kind: input, shape index: {}]
  %s7 = inlined_call_operand.vmem [shape: f32[8,384], index: 7, kind: output, shape index: {}]
  %s8 = sld [smem:[#allocation0]]
  $region66: #{sma_forward.1} parent=0
    _
  %s10 = ssub.s32 1, %s8
  %s11 = scalar_select 0, %s10, %s8
  $region1: #{sma_forward.1} parent=0
    #allocation2 [shape = 'u8[4096]{0}', space=vmem, size = 0x1000, scoped, tag = 'input window, operand 0, single buffered']
    #allocation3 [shape = 's32[1]{0}', space=sflag, size = 0x4, scoped, tag = 'scoped memory for sma_forward.1']
    #allocation4 [shape = 'u8[131072]{0}', space=vmem, size = 0x20000, scoped, tag = 'input window, operand 1, single buffered']
    #allocation5 [shape = 's32[1]{0}', space=sflag, size = 0x4, scoped, tag = 'scoped memory for sma_forward.1']
    #allocation6 [shape = 'u8[524288]{0}', space=vmem, size = 0x80000, scoped, tag = 'input window, operand 2, single buffered']
    #allocation7 [shape = 'u8[65536]{0}', space=vmem, size = 0x10000, scoped, tag = 'input window, operand 3, single buffered']
    #allocation8 [shape = 's32[1]{0}', space=sflag, size = 0x4, scoped, tag = 'scoped memory for sma_forward.1']
    #allocation9 [shape = 'u8[163840]{0}', space=vmem, size = 0x28000, scoped, tag = 'input window, operand 4, single buffered']
    #allocation10 [shape = 'u8[131072]{0}', space=vmem, size = 0x20000, scoped, tag = 'input window, operand 5, single buffered']
    #allocation11 [shape = 's32[1]{0}', space=sflag, size = 0x4, scoped, tag = 'scoped memory for sma_forward.1']
    #allocation12 [shape = 'u8[18944]{0}', space=vmem, size = 0x4c00, scoped, tag = 'input window, operand 6, single buffered']
    %12 = vsyncpa [#allocation3], 0
    %13 = vsyncpa [#allocation5], 0
    %14 = vsyncpa [#allocation8], 0
    %15 = vsyncpa [#allocation11], 0
    // Predicated region
    $region2: #{sma_forward.1} parent=1 // pred_check
      _
    $region3: #{sma_forward.1} parent=1 // pred_check_branch
      %17 = sbr.rel (0) target = $region5
    $region4: #{sma_forward.1} parent=1 // pred_region
      %s19 = ssub.s32 128, 128
      %20 = vsyncadd [#allocation3], %s19
      %s22 = sshll.u32 [#allocation2], 4
      %s23 = int_to_ptr.vmem [resolvable:$true] %s22
      %25 = dma.hbm_to_vmem [thread:$0]  %s0, 128, %s23, [#allocation3]
    $region5: #{sma_forward.1} parent=1 // pred_fallthru
      _
    // Predicated region
    $region6: #{sma_forward.1} parent=1 // pred_check
      _
    $region7: #{sma_forward.1} parent=1 // pred_check_branch
      %27 = sbr.rel (0) target = $region9
    $region8: #{sma_forward.1} parent=1 // pred_region
      %s29 = ssub.s32 4096, 4096
      %30 = vsyncadd [#allocation5], %s29
      %s31 = sshll.u32 [#allocation4], 4
      %s32 = int_to_ptr.vmem [resolvable:$true] %s31
      %37 = dma.hbm_to_vmem [thread:$0]  %s1, 4096, %s32, [#allocation5], 512, 512, 32
    $region9: #{sma_forward.1} parent=1 // pred_fallthru
      _
    // Predicated region
    $region10: #{sma_forward.1} parent=1 // pred_check
      _
    $region11: #{sma_forward.1} parent=1 // pred_check_branch
      %39 = sbr.rel (0) target = $region13
    $region12: #{sma_forward.1} parent=1 // pred_region
      %s41 = ssub.s32 16384, 16384
      %42 = vsyncadd [#allocation5], %s41
      %s43 = sshll.u32 [#allocation6], 4
      %s44 = int_to_ptr.vmem [resolvable:$true] %s43
      %49 = dma.hbm_to_vmem [thread:$0]  %s2, 16384, %s44, [#allocation5], 128, 128, 8
    $region13: #{sma_forward.1} parent=1 // pred_fallthru
      _
    // Predicated region
    $region14: #{sma_forward.1} parent=1 // pred_check
      _
    $region15: #{sma_forward.1} parent=1 // pred_check_branch
      %51 = sbr.rel (0) target = $region17
    $region16: #{sma_forward.1} parent=1 // pred_region
      %s53 = ssub.s32 2048, 2048
      %54 = vsyncadd [#allocation8], %s53
      %s55 = sshll.u32 [#allocation7], 4
      %s56 = int_to_ptr.vmem [resolvable:$true] %s55
      %61 = dma.hbm_to_vmem [thread:$0]  %s3, 2048, %s56, [#allocation8], 64, 64, 4
    $region17: #{sma_forward.1} parent=1 // pred_fallthru
      _
    // Predicated region
    $region18: #{sma_forward.1} parent=1 // pred_check
      _
    $region19: #{sma_forward.1} parent=1 // pred_check_branch
      %63 = sbr.rel (0) target = $region21
    $region20: #{sma_forward.1} parent=1 // pred_region
      %s65 = ssub.s32 5120, 5120
      %66 = vsyncadd [#allocation8], %s65
      %s67 = sshll.u32 [#allocation9], 4
      %s68 = int_to_ptr.vmem [resolvable:$true] %s67
      %73 = dma.hbm_to_vmem [thread:$0]  %s4, 5120, %s68, [#allocation8], 320, 320, 20
    $region21: #{sma_forward.1} parent=1 // pred_fallthru
      _
    // Predicated region
    $region22: #{sma_forward.1} parent=1 // pred_check
      _
    $region23: #{sma_forward.1} parent=1 // pred_check_branch
      %75 = sbr.rel (0) target = $region25
    $region24: #{sma_forward.1} parent=1 // pred_region
      %s77 = ssub.s32 4096, 4096
      %78 = vsyncadd [#allocation11], %s77
      %s79 = sshll.u32 [#allocation10], 4
      %s80 = int_to_ptr.vmem [resolvable:$true] %s79
      %85 = dma.hbm_to_vmem [thread:$0]  %s5, 4096, %s80, [#allocation11], 64, 64, 4
    $region25: #{sma_forward.1} parent=1 // pred_fallthru
      _
    // Predicated region
    $region26: #{sma_forward.1} parent=1 // pred_check
      _
    $region27: #{sma_forward.1} parent=1 // pred_check_branch
      %87 = sbr.rel (0) target = $region29
    $region28: #{sma_forward.1} parent=1 // pred_region
      %s89 = ssub.s32 592, 592
      %90 = vsyncadd [#allocation11], %s89
      %s92 = sshll.u32 [#allocation12], 4
      %s93 = int_to_ptr.vmem [resolvable:$true] %s92
      %95 = dma.hbm_to_vmem [thread:$0]  %s6, 592, %s93, [#allocation11]
    $region29: #{sma_forward.1} parent=1 // pred_fallthru
      _
    // Predicated region
    $region30: #{sma_forward.1} parent=1 // pred_check
      _
    $region31: #{sma_forward.1} parent=1 // pred_check_branch
      %97 = sbr.rel (0) target = $region33
    $region32: #{sma_forward.1} parent=1 // pred_region
      %98 = dma.done [#allocation3], 128
    $region33: #{sma_forward.1} parent=1 // pred_fallthru
      _
    // Predicated region
    $region34: #{sma_forward.1} parent=1 // pred_check
      _
    $region35: #{sma_forward.1} parent=1 // pred_check_branch
      %100 = sbr.rel (0) target = $region37
    $region36: #{sma_forward.1} parent=1 // pred_region
      %101 = dma.done [#allocation5], 4096
    $region37: #{sma_forward.1} parent=1 // pred_fallthru
      _
    // Predicated region
    $region38: #{sma_forward.1} parent=1 // pred_check
      _
    $region39: #{sma_forward.1} parent=1 // pred_check_branch
      %103 = sbr.rel (0) target = $region41
    $region40: #{sma_forward.1} parent=1 // pred_region
      %104 = dma.done [#allocation5], 16384
    $region41: #{sma_forward.1} parent=1 // pred_fallthru
      _
    // Predicated region
    $region42: #{sma_forward.1} parent=1 // pred_check
      _
    $region43: #{sma_forward.1} parent=1 // pred_check_branch
      %106 = sbr.rel (0) target = $region45
    $region44: #{sma_forward.1} parent=1 // pred_region
      %107 = dma.done [#allocation8], 2048
    $region45: #{sma_forward.1} parent=1 // pred_fallthru
      _
    // Predicated region
    $region46: #{sma_forward.1} parent=1 // pred_check
      _
    $region47: #{sma_forward.1} parent=1 // pred_check_branch
      %109 = sbr.rel (0) target = $region49
    $region48: #{sma_forward.1} parent=1 // pred_region
      %110 = dma.done [#allocation8], 5120
    $region49: #{sma_forward.1} parent=1 // pred_fallthru
      _
    // Predicated region
    $region50: #{sma_forward.1} parent=1 // pred_check
      _
    $region51: #{sma_forward.1} parent=1 // pred_check_branch
      %112 = sbr.rel (0) target = $region53
    $region52: #{sma_forward.1} parent=1 // pred_region
      %113 = dma.done [#allocation11], 4096
    $region53: #{sma_forward.1} parent=1 // pred_fallthru
      _
    // Predicated region
    $region54: #{sma_forward.1} parent=1 // pred_check
      _
    $region55: #{sma_forward.1} parent=1 // pred_check_branch
      %115 = sbr.rel (0) target = $region57
    $region56: #{sma_forward.1} parent=1 // pred_region
      %116 = dma.done [#allocation11], 592
    $region57: #{sma_forward.1} parent=1 // pred_fallthru
      _
    %v118 = vld [vmem:[#allocation2] sm:$0xff]
    %v119 = vld [vmem:[#allocation12] sm:$0xff]
    %v120 = vpack.c.bf16 %v118, %v118
    %v121 = vld [vmem:[#allocation4] sm:$0xff]
    %v122 = vld [vmem:[#allocation4 + $0x8] sm:$0xff]
    %v123 = vld [vmem:[#allocation4 + $0x10] sm:$0xff]
    %v124 = vld [vmem:[#allocation4 + $0x18] sm:$0xff]
    %v125 = vld [vmem:[#allocation4 + $0x20] sm:$0xff]
    %v126 = vld [vmem:[#allocation4 + $0x28] sm:$0xff]
    %v127 = vld [vmem:[#allocation4 + $0x30] sm:$0xff]
    %v128 = vld [vmem:[#allocation4 + $0x38] sm:$0xff]
    %v129 = vld [vmem:[#allocation4 + $0x40] sm:$0xff]
    %v130 = vld [vmem:[#allocation4 + $0x48] sm:$0xff]
    %v131 = vld [vmem:[#allocation4 + $0x50] sm:$0xff]
    %v132 = vld [vmem:[#allocation4 + $0x58] sm:$0xff]
    %v133 = vld [vmem:[#allocation4 + $0x60] sm:$0xff]
    %v134 = vld [vmem:[#allocation4 + $0x68] sm:$0xff]
    %v135 = vld [vmem:[#allocation4 + $0x70] sm:$0xff]
    %v136 = vld [vmem:[#allocation4 + $0x78] sm:$0xff]
    %v137 = vld [vmem:[#allocation4 + $0x80] sm:$0xff]
    %v138 = vld [vmem:[#allocation4 + $0x88] sm:$0xff]
    %v139 = vld [vmem:[#allocation4 + $0x90] sm:$0xff]
    %v140 = vld [vmem:[#allocation4 + $0x98] sm:$0xff]
    %v141 = vld [vmem:[#allocation4 + $0xa0] sm:$0xff]
    %v142 = vld [vmem:[#allocation4 + $0xa8] sm:$0xff]
    %v143 = vld [vmem:[#allocation4 + $0xb0] sm:$0xff]
    %v144 = vld [vmem:[#allocation4 + $0xb8] sm:$0xff]
    %v145 = vld [vmem:[#allocation4 + $0xc0] sm:$0xff]
    %v146 = vld [vmem:[#allocation4 + $0xc8] sm:$0xff]
    %v147 = vld [vmem:[#allocation4 + $0xd0] sm:$0xff]
    %v148 = vld [vmem:[#allocation4 + $0xd8] sm:$0xff]
    %v149 = vld [vmem:[#allocation4 + $0xe0] sm:$0xff]
    %v150 = vld [vmem:[#allocation4 + $0xe8] sm:$0xff]
    %v151 = vld [vmem:[#allocation4 + $0xf0] sm:$0xff]
    %v152 = vld [vmem:[#allocation4 + $0xf8] sm:$0xff]
    %v154 = vlaneseq
    %v155 = vshrl.u32 %v154, 7
    %v156 = vsub.s32 0, %v155
    %v157 = vrot.slane %v119, %v156
    %v158 = vlaneseq
    %v159 = vshrl.u32 %v158, 7
    %v160 = vsub.s32 1, %v159
    %v161 = vrot.slane %v119, %v160
    %v162 = vlaneseq
    %v163 = vshrl.u32 %v162, 7
    %v164 = vsub.s32 2, %v163
    %v165 = vrot.slane %v119, %v164
    %v166 = vlaneseq
    %v167 = vshrl.u32 %v166, 7
    %v168 = vsub.s32 3, %v167
    %v169 = vrot.slane %v119, %v168
    %v170 = vlaneseq
    %v171 = vshrl.u32 %v170, 7
    %v172 = vsub.s32 4, %v171
    %v173 = vrot.slane %v119, %v172
    %v174 = vlaneseq
    %v175 = vshrl.u32 %v174, 7
    %v176 = vsub.s32 5, %v175
    %v177 = vrot.slane %v119, %v176
    %v178 = vlaneseq
    %v179 = vshrl.u32 %v178, 7
    %v180 = vsub.s32 6, %v179
    %v181 = vrot.slane %v119, %v180
    %v182 = vlaneseq
    %v183 = vshrl.u32 %v182, 7
    %v184 = vsub.s32 7, %v183
    %v185 = vrot.slane %v119, %v184
    %v226 = vunpack.c.l.b16 %v121
    %v227 = vunpack.c.h.b16 %v121
    %v228 = vunpack.c.l.b16 %v122
    %v229 = vunpack.c.h.b16 %v122
    %v230 = vunpack.c.l.b16 %v123
    %v231 = vunpack.c.h.b16 %v123
    %v232 = vunpack.c.l.b16 %v124
    %v233 = vunpack.c.h.b16 %v124
    %v234 = vunpack.c.l.b16 %v125
    %v235 = vunpack.c.h.b16 %v125
    %v236 = vunpack.c.l.b16 %v126
    %v237 = vunpack.c.h.b16 %v126
    %v238 = vunpack.c.l.b16 %v127
    %v239 = vunpack.c.h.b16 %v127
    %v240 = vunpack.c.l.b16 %v128
    %v241 = vunpack.c.h.b16 %v128
    %v242 = vunpack.c.l.b16 %v129
    %v243 = vunpack.c.h.b16 %v129
    %v244 = vunpack.c.l.b16 %v130
    %v245 = vunpack.c.h.b16 %v130
    %v246 = vunpack.c.l.b16 %v131
    %v247 = vunpack.c.h.b16 %v131
    %v248 = vunpack.c.l.b16 %v132
    %v249 = vunpack.c.h.b16 %v132
    %v250 = vunpack.c.l.b16 %v133
    %v251 = vunpack.c.h.b16 %v133
    %v252 = vunpack.c.l.b16 %v134
    %v253 = vunpack.c.h.b16 %v134
    %v254 = vunpack.c.l.b16 %v135
    %v255 = vunpack.c.h.b16 %v135
    %v256 = vunpack.c.l.b16 %v136
    %v257 = vunpack.c.h.b16 %v136
    %v258 = vunpack.c.l.b16 %v137
    %v259 = vunpack.c.h.b16 %v137
    %v260 = vunpack.c.l.b16 %v138
    %v261 = vunpack.c.h.b16 %v138
    %v262 = vunpack.c.l.b16 %v139
    %v263 = vunpack.c.h.b16 %v139
    %v264 = vunpack.c.l.b16 %v140
    %v265 = vunpack.c.h.b16 %v140
    %v266 = vunpack.c.l.b16 %v141
    %v267 = vunpack.c.h.b16 %v141
    %v268 = vunpack.c.l.b16 %v142
    %v269 = vunpack.c.h.b16 %v142
    %v270 = vunpack.c.l.b16 %v143
    %v271 = vunpack.c.h.b16 %v143
    %v272 = vunpack.c.l.b16 %v144
    %v273 = vunpack.c.h.b16 %v144
    %v274 = vunpack.c.l.b16 %v145
    %v275 = vunpack.c.h.b16 %v145
    %v276 = vunpack.c.l.b16 %v146
    %v277 = vunpack.c.h.b16 %v146
    %v278 = vunpack.c.l.b16 %v147
    %v279 = vunpack.c.h.b16 %v147
    %v280 = vunpack.c.l.b16 %v148
    %v281 = vunpack.c.h.b16 %v148
    %v282 = vunpack.c.l.b16 %v149
    %v283 = vunpack.c.h.b16 %v149
    %v284 = vunpack.c.l.b16 %v150
    %v285 = vunpack.c.h.b16 %v150
    %v286 = vunpack.c.l.b16 %v151
    %v287 = vunpack.c.h.b16 %v151
    %v288 = vunpack.c.l.b16 %v152
    %v289 = vunpack.c.h.b16 %v152
    %v290 = vpack.c.b16 %v234, %v226
    %v291 = vpack.c.b16 %v235, %v227
    %v292 = vpack.c.b16 %v236, %v228
    %v293 = vpack.c.b16 %v237, %v229
    %v294 = vpack.c.b16 %v238, %v230
    %v295 = vpack.c.b16 %v239, %v231
    %v296 = vpack.c.b16 %v240, %v232
    %v297 = vpack.c.b16 %v241, %v233
    %v298 = vpack.c.b16 %v250, %v242
    %v299 = vpack.c.b16 %v251, %v243
    %v300 = vpack.c.b16 %v252, %v244
    %v301 = vpack.c.b16 %v253, %v245
    %v302 = vpack.c.b16 %v254, %v246
    %v303 = vpack.c.b16 %v255, %v247
    %v304 = vpack.c.b16 %v256, %v248
    %v305 = vpack.c.b16 %v257, %v249
    %v306 = vpack.c.b16 %v266, %v258
    %v307 = vpack.c.b16 %v267, %v259
    %v308 = vpack.c.b16 %v268, %v260
    %v309 = vpack.c.b16 %v269, %v261
    %v310 = vpack.c.b16 %v270, %v262
    %v311 = vpack.c.b16 %v271, %v263
    %v312 = vpack.c.b16 %v272, %v264
    %v313 = vpack.c.b16 %v273, %v265
    %v314 = vpack.c.b16 %v282, %v274
    %v315 = vpack.c.b16 %v283, %v275
    %v316 = vpack.c.b16 %v284, %v276
    %v317 = vpack.c.b16 %v285, %v277
    %v318 = vpack.c.b16 %v286, %v278
    %v319 = vpack.c.b16 %v287, %v279
    %v320 = vpack.c.b16 %v288, %v280
    %v321 = vpack.c.b16 %v289, %v281
    %vm354 = vcmask 523264
    %v356 = vsel %vm354, %v120, 0
    %358 = vmatprep.subr.bf16.mxu0 0
    %359 = vmatpush1.bf16.msra.mxu0 0
    %360 = vmatprep.subr.bf16.mxu0 0
    %361 = vmatpush1.bf16.msra.mxu0 0
    %362 = vmatprep.subr.bf16.mxu0 0
    %363 = vmatpush1.bf16.msra.mxu0 0
    %364 = vmatprep.subr.bf16.mxu0 0
    %365 = vmatpush1.bf16.msra.mxu0 0
    %366 = vmatprep.subr.bf16.mxu0 %v315
    %367 = vmatpush1.bf16.msra.mxu0 %v314
    %368 = vmatprep.subr.bf16.mxu0 %v307
    %369 = vmatpush1.bf16.msra.mxu0 %v306
    %370 = vmatprep.subr.bf16.mxu0 %v299
    %371 = vmatpush1.bf16.msra.mxu0 %v298
    %372 = vmatprep.subr.bf16.mxu0 %v291
    %373 = vmatpush1.bf16.msra.mxu0 %v290
    %374 = vmatprep.subr.bf16.mxu0 0
    %375 = vmatpush2.bf16.msra.mxu0 0
    %376 = vmatprep.subr.bf16.mxu0 0
    %377 = vmatpush2.bf16.msra.mxu0 0
    %378 = vmatprep.subr.bf16.mxu0 0
    %379 = vmatpush2.bf16.msra.mxu0 0
    %380 = vmatprep.subr.bf16.mxu0 0
    %381 = vmatpush2.bf16.msra.mxu0 0
    %382 = vmatprep.subr.bf16.mxu0 0
    %383 = vmatpush2.bf16.msra.mxu0 0
    %384 = vmatprep.subr.bf16.mxu0 0
    %385 = vmatpush2.bf16.msra.mxu0 0
    %386 = vmatprep.subr.bf16.mxu0 0
    %387 = vmatpush2.bf16.msra.mxu0 0
    %388 = vmatprep.subr.bf16.mxu0 0
    %389 = vmatpush2.bf16.msra.mxu0 0
    %390 = vmatprep.mubr.bf16.mxu0 0
    %391 = vmatmul.mubr.bf16.gmra.mxu0 %v356
    %v392 = vpop.f32.mrf.mxu0
    %v393 = vadd.f32 %v157, %v392
    %v394 = vpop.f32.mrf.mxu0
    %v395 = vadd.f32 %v161, %v394
    %v396 = vpop.f32.mrf.mxu0
    %v397 = vpop.f32.mrf.mxu0
    %398 = vdwg.mxu0
    %399 = vmatprep.subr.bf16.mxu0 0
    %400 = vmatpush1.bf16.msra.mxu0 0
    %401 = vmatprep.subr.bf16.mxu0 0
    %402 = vmatpush1.bf16.msra.mxu0 0
    %403 = vmatprep.subr.bf16.mxu0 0
    %404 = vmatpush1.bf16.msra.mxu0 0
    %405 = vmatprep.subr.bf16.mxu0 0
    %406 = vmatpush1.bf16.msra.mxu0 0
    %407 = vmatprep.subr.bf16.mxu0 %v317
    %408 = vmatpush1.bf16.msra.mxu0 %v316
    %409 = vmatprep.subr.bf16.mxu0 %v309
    %410 = vmatpush1.bf16.msra.mxu0 %v308
    %411 = vmatprep.subr.bf16.mxu0 %v301
    %412 = vmatpush1.bf16.msra.mxu0 %v300
    %413 = vmatprep.subr.bf16.mxu0 %v293
    %414 = vmatpush1.bf16.msra.mxu0 %v292
    %415 = vmatprep.subr.bf16.mxu0 0
    %416 = vmatpush2.bf16.msra.mxu0 0
    %417 = vmatprep.subr.bf16.mxu0 0
    %418 = vmatpush2.bf16.msra.mxu0 0
    %419 = vmatprep.subr.bf16.mxu0 0
    %420 = vmatpush2.bf16.msra.mxu0 0
    %421 = vmatprep.subr.bf16.mxu0 0
    %422 = vmatpush2.bf16.msra.mxu0 0
    %423 = vmatprep.subr.bf16.mxu0 0
    %424 = vmatpush2.bf16.msra.mxu0 0
    %425 = vmatprep.subr.bf16.mxu0 0
    %426 = vmatpush2.bf16.msra.mxu0 0
    %427 = vmatprep.subr.bf16.mxu0 0
    %428 = vmatpush2.bf16.msra.mxu0 0
    %429 = vmatprep.subr.bf16.mxu0 0
    %430 = vmatpush2.bf16.msra.mxu0 0
    %431 = vmatprep.mubr.bf16.mxu0 0
    %432 = vmatmul.mubr.bf16.gmra.mxu0 %v356
    %v433 = vpop.f32.mrf.mxu0
    %v434 = vadd.f32 %v165, %v433
    %v435 = vpop.f32.mrf.mxu0
    %v436 = vadd.f32 %v169, %v435
    %v437 = vpop.f32.mrf.mxu0
    %v438 = vpop.f32.mrf.mxu0
    %439 = vdwg.mxu0
    %440 = vmatprep.subr.bf16.mxu0 0
    %441 = vmatpush1.bf16.msra.mxu0 0
    %442 = vmatprep.subr.bf16.mxu0 0
    %443 = vmatpush1.bf16.msra.mxu0 0
    %444 = vmatprep.subr.bf16.mxu0 0
    %445 = vmatpush1.bf16.msra.mxu0 0
    %446 = vmatprep.subr.bf16.mxu0 0
    %447 = vmatpush1.bf16.msra.mxu0 0
    %448 = vmatprep.subr.bf16.mxu0 %v319
    %449 = vmatpush1.bf16.msra.mxu0 %v318
    %450 = vmatprep.subr.bf16.mxu0 %v311
    %451 = vmatpush1.bf16.msra.mxu0 %v310
    %452 = vmatprep.subr.bf16.mxu0 %v303
    %453 = vmatpush1.bf16.msra.mxu0 %v302
    %454 = vmatprep.subr.bf16.mxu0 %v295
    %455 = vmatpush1.bf16.msra.mxu0 %v294
    %456 = vmatprep.subr.bf16.mxu0 0
    %457 = vmatpush2.bf16.msra.mxu0 0
    %458 = vmatprep.subr.bf16.mxu0 0
    %459 = vmatpush2.bf16.msra.mxu0 0
    %460 = vmatprep.subr.bf16.mxu0 0
    %461 = vmatpush2.bf16.msra.mxu0 0
    %462 = vmatprep.subr.bf16.mxu0 0
    %463 = vmatpush2.bf16.msra.mxu0 0
    %464 = vmatprep.subr.bf16.mxu0 0
    %465 = vmatpush2.bf16.msra.mxu0 0
    %466 = vmatprep.subr.bf16.mxu0 0
    %467 = vmatpush2.bf16.msra.mxu0 0
    %468 = vmatprep.subr.bf16.mxu0 0
    %469 = vmatpush2.bf16.msra.mxu0 0
    %470 = vmatprep.subr.bf16.mxu0 0
    %471 = vmatpush2.bf16.msra.mxu0 0
    %472 = vmatprep.mubr.bf16.mxu0 0
    %473 = vmatmul.mubr.bf16.gmra.mxu0 %v356
    %v474 = vpop.f32.mrf.mxu0
    %v475 = vadd.f32 %v173, %v474
    %v476 = vpop.f32.mrf.mxu0
    %v477 = vadd.f32 %v177, %v476
    %v478 = vpop.f32.mrf.mxu0
    %v479 = vpop.f32.mrf.mxu0
    %480 = vdwg.mxu0
    %481 = vmatprep.subr.bf16.mxu0 0
    %482 = vmatpush1.bf16.msra.mxu0 0
    %483 = vmatprep.subr.bf16.mxu0 0
    %484 = vmatpush1.bf16.msra.mxu0 0
    %485 = vmatprep.subr.bf16.mxu0 0
    %486 = vmatpush1.bf16.msra.mxu0 0
    %487 = vmatprep.subr.bf16.mxu0 0
    %488 = vmatpush1.bf16.msra.mxu0 0
    %489 = vmatprep.subr.bf16.mxu0 %v321
    %490 = vmatpush1.bf16.msra.mxu0 %v320
    %491 = vmatprep.subr.bf16.mxu0 %v313
    %492 = vmatpush1.bf16.msra.mxu0 %v312
    %493 = vmatprep.subr.bf16.mxu0 %v305
    %494 = vmatpush1.bf16.msra.mxu0 %v304
    %495 = vmatprep.subr.bf16.mxu0 %v297
    %496 = vmatpush1.bf16.msra.mxu0 %v296
    %497 = vmatprep.subr.bf16.mxu0 0
    %498 = vmatpush2.bf16.msra.mxu0 0
    %499 = vmatprep.subr.bf16.mxu0 0
    %500 = vmatpush2.bf16.msra.mxu0 0
    %501 = vmatprep.subr.bf16.mxu0 0
    %502 = vmatpush2.bf16.msra.mxu0 0
    %503 = vmatprep.subr.bf16.mxu0 0
    %504 = vmatpush2.bf16.msra.mxu0 0
    %505 = vmatprep.subr.bf16.mxu0 0
    %506 = vmatpush2.bf16.msra.mxu0 0
    %507 = vmatprep.subr.bf16.mxu0 0
    %508 = vmatpush2.bf16.msra.mxu0 0
    %509 = vmatprep.subr.bf16.mxu0 0
    %510 = vmatpush2.bf16.msra.mxu0 0
    %511 = vmatprep.subr.bf16.mxu0 0
    %512 = vmatpush2.bf16.msra.mxu0 0
    %513 = vmatprep.mubr.bf16.mxu0 0
    %514 = vmatmul.mubr.bf16.gmra.mxu0 %v356
    %v515 = vpop.f32.mrf.mxu0
    %v516 = vadd.f32 %v181, %v515
    %v517 = vpop.f32.mrf.mxu0
    %v518 = vadd.f32 %v185, %v517
    %v519 = vpop.f32.mrf.mxu0
    %v520 = vpop.f32.mrf.mxu0
    %521 = vdwg.mxu0
    %v522 = vmax.f32 %v393, 0.0
    %v523 = vmax.f32 %v395, 0.0
    %v524 = vmax.f32 %v434, 0.0
    %v525 = vmax.f32 %v436, 0.0
    %v526 = vmax.f32 %v475, 0.0
    %v527 = vmax.f32 %v477, 0.0
    %v528 = vmax.f32 %v516, 0.0
    %v529 = vmax.f32 %v518, 0.0
    %v530 = vld [vmem:[#allocation12 + $0x8] sm:$0xff]
    %v531 = vld [vmem:[#allocation12 + $0x10] sm:$0xff]
    %v532 = vrot.slane %v522, 4
    %v533 = vadd.f32 %v522, %v532
    %v534 = vrot.slane %v533, 2
    %v535 = vadd.f32 %v533, %v534
    %v536 = vrot.slane %v535, 1
    %v537 = vadd.f32 %v535, %v536
    %v538 = vrot.slane %v523, 4
    %v539 = vadd.f32 %v523, %v538
    %v540 = vrot.slane %v539, 2
    %v541 = vadd.f32 %v539, %v540
    %v542 = vrot.slane %v541, 1
    %v543 = vadd.f32 %v541, %v542
    %v544 = vrot.slane %v524, 4
    %v545 = vadd.f32 %v524, %v544
    %v546 = vrot.slane %v545, 2
    %v547 = vadd.f32 %v545, %v546
    %v548 = vrot.slane %v547, 1
    %v549 = vadd.f32 %v547, %v548
    %v550 = vrot.slane %v525, 4
    %v551 = vadd.f32 %v525, %v550
    %v552 = vrot.slane %v551, 2
    %v553 = vadd.f32 %v551, %v552
    %v554 = vrot.slane %v553, 1
    %v555 = vadd.f32 %v553, %v554
    %v556 = vrot.slane %v526, 4
    %v557 = vadd.f32 %v526, %v556
    %v558 = vrot.slane %v557, 2
    %v559 = vadd.f32 %v557, %v558
    %v560 = vrot.slane %v559, 1
    %v561 = vadd.f32 %v559, %v560
    %v562 = vrot.slane %v527, 4
    %v563 = vadd.f32 %v527, %v562
    %v564 = vrot.slane %v563, 2
    %v565 = vadd.f32 %v563, %v564
    %v566 = vrot.slane %v565, 1
    %v567 = vadd.f32 %v565, %v566
    %v568 = vrot.slane %v528, 4
    %v569 = vadd.f32 %v528, %v568
    %v570 = vrot.slane %v569, 2
    %v571 = vadd.f32 %v569, %v570
    %v572 = vrot.slane %v571, 1
    %v573 = vadd.f32 %v571, %v572
    %v574 = vrot.slane %v529, 4
    %v575 = vadd.f32 %v529, %v574
    %v576 = vrot.slane %v575, 2
    %v577 = vadd.f32 %v575, %v576
    %v578 = vrot.slane %v577, 1
    %v579 = vadd.f32 %v577, %v578
    %v580 = vrcp.pop 8.0
    %v581 = vmul.f32 %v537, %v580
    %v582 = vmul.f32 %v543, %v580
    %v583 = vmul.f32 %v549, %v580
    %v584 = vmul.f32 %v555, %v580
    %v585 = vmul.f32 %v561, %v580
    %v586 = vmul.f32 %v567, %v580
    %v587 = vmul.f32 %v573, %v580
    %v588 = vmul.f32 %v579, %v580
    %v589 = vsub.f32 %v522, %v581
    %v590 = vsub.f32 %v523, %v582
    %v591 = vsub.f32 %v524, %v583
    %v592 = vsub.f32 %v525, %v584
    %v593 = vsub.f32 %v526, %v585
    %v594 = vsub.f32 %v527, %v586
    %v595 = vsub.f32 %v528, %v587
    %v596 = vsub.f32 %v529, %v588
    %v597 = vmul.f32 %v589, %v589
    %v598 = vmul.f32 %v590, %v590
    %v599 = vmul.f32 %v591, %v591
    %v600 = vmul.f32 %v592, %v592
    %v601 = vmul.f32 %v593, %v593
    %v602 = vmul.f32 %v594, %v594
    %v603 = vmul.f32 %v595, %v595
    %v604 = vmul.f32 %v596, %v596
    %v605 = vrot.slane %v597, 4
    %v606 = vadd.f32 %v597, %v605
    %v607 = vrot.slane %v606, 2
    %v608 = vadd.f32 %v606, %v607
    %v609 = vrot.slane %v608, 1
    %v610 = vadd.f32 %v608, %v609
    %v611 = vrot.slane %v598, 4
    %v612 = vadd.f32 %v598, %v611
    %v613 = vrot.slane %v612, 2
    %v614 = vadd.f32 %v612, %v613
    %v615 = vrot.slane %v614, 1
    %v616 = vadd.f32 %v614, %v615
    %v617 = vrot.slane %v599, 4
    %v618 = vadd.f32 %v599, %v617
    %v619 = vrot.slane %v618, 2
    %v620 = vadd.f32 %v618, %v619
    %v621 = vrot.slane %v620, 1
    %v622 = vadd.f32 %v620, %v621
    %v623 = vrot.slane %v600, 4
    %v624 = vadd.f32 %v600, %v623
    %v625 = vrot.slane %v624, 2
    %v626 = vadd.f32 %v624, %v625
    %v627 = vrot.slane %v626, 1
    %v628 = vadd.f32 %v626, %v627
    %v629 = vrot.slane %v601, 4
    %v630 = vadd.f32 %v601, %v629
    %v631 = vrot.slane %v630, 2
    %v632 = vadd.f32 %v630, %v631
    %v633 = vrot.slane %v632, 1
    %v634 = vadd.f32 %v632, %v633
    %v635 = vrot.slane %v602, 4
    %v636 = vadd.f32 %v602, %v635
    %v637 = vrot.slane %v636, 2
    %v638 = vadd.f32 %v636, %v637
    %v639 = vrot.slane %v638, 1
    %v640 = vadd.f32 %v638, %v639
    %v641 = vrot.slane %v603, 4
    %v642 = vadd.f32 %v603, %v641
    %v643 = vrot.slane %v642, 2
    %v644 = vadd.f32 %v642, %v643
    %v645 = vrot.slane %v644, 1
    %v646 = vadd.f32 %v644, %v645
    %v647 = vrot.slane %v604, 4
    %v648 = vadd.f32 %v604, %v647
    %v649 = vrot.slane %v648, 2
    %v650 = vadd.f32 %v648, %v649
    %v651 = vrot.slane %v650, 1
    %v652 = vadd.f32 %v650, %v651
    %v653 = vmul.f32 %v610, %v580
    %v654 = vmul.f32 %v616, %v580
    %v655 = vmul.f32 %v622, %v580
    %v656 = vmul.f32 %v628, %v580
    %v657 = vmul.f32 %v634, %v580
    %v658 = vmul.f32 %v640, %v580
    %v659 = vmul.f32 %v646, %v580
    %v660 = vmul.f32 %v652, %v580
    %v661 = vadd.f32 %v653, 1e-05
    %v662 = vadd.f32 %v654, 1e-05
    %v663 = vadd.f32 %v655, 1e-05
    %v664 = vadd.f32 %v656, 1e-05
    %v665 = vadd.f32 %v657, 1e-05
    %v666 = vadd.f32 %v658, 1e-05
    %v667 = vadd.f32 %v659, 1e-05
    %v668 = vadd.f32 %v660, 1e-05
    %v669 = vrsqrt.pop %v661
    %v670 = vrsqrt.pop %v662
    %v671 = vrsqrt.pop %v663
    %v672 = vrsqrt.pop %v664
    %v673 = vrsqrt.pop %v665
    %v674 = vrsqrt.pop %v666
    %v675 = vrsqrt.pop %v667
    %v676 = vrsqrt.pop %v668
    %v678 = vlaneseq
    %v679 = vshrl.u32 %v678, 7
    %v680 = vsub.s32 0, %v679
    %v681 = vrot.slane %v530, %v680
    %v682 = vlaneseq
    %v683 = vshrl.u32 %v682, 7
    %v684 = vsub.s32 1, %v683
    %v685 = vrot.slane %v530, %v684
    %v686 = vlaneseq
    %v687 = vshrl.u32 %v686, 7
    %v688 = vsub.s32 2, %v687
    %v689 = vrot.slane %v530, %v688
    %v690 = vlaneseq
    %v691 = vshrl.u32 %v690, 7
    %v692 = vsub.s32 3, %v691
    %v693 = vrot.slane %v530, %v692
    %v694 = vlaneseq
    %v695 = vshrl.u32 %v694, 7
    %v696 = vsub.s32 4, %v695
    %v697 = vrot.slane %v530, %v696
    %v698 = vlaneseq
    %v699 = vshrl.u32 %v698, 7
    %v700 = vsub.s32 5, %v699
    %v701 = vrot.slane %v530, %v700
    %v702 = vlaneseq
    %v703 = vshrl.u32 %v702, 7
    %v704 = vsub.s32 6, %v703
    %v705 = vrot.slane %v530, %v704
    %v706 = vlaneseq
    %v707 = vshrl.u32 %v706, 7
    %v708 = vsub.s32 7, %v707
    %v709 = vrot.slane %v530, %v708
    %v718 = vmul.f32 %v669, %v681
    %v719 = vmul.f32 %v670, %v685
    %v720 = vmul.f32 %v671, %v689
    %v721 = vmul.f32 %v672, %v693
    %v722 = vmul.f32 %v673, %v697
    %v723 = vmul.f32 %v674, %v701
    %v724 = vmul.f32 %v675, %v705
    %v725 = vmul.f32 %v676, %v709
    %v726 = vlaneseq
    %v727 = vshrl.u32 %v726, 7
    %v728 = vsub.s32 0, %v727
    %v729 = vrot.slane %v718, %v728
    %v730 = vlaneseq
    %v731 = vshrl.u32 %v730, 7
    %v732 = vsub.s32 0, %v731
    %v733 = vrot.slane %v719, %v732
    %v734 = vlaneseq
    %v735 = vshrl.u32 %v734, 7
    %v736 = vsub.s32 0, %v735
    %v737 = vrot.slane %v720, %v736
    %v738 = vlaneseq
    %v739 = vshrl.u32 %v738, 7
    %v740 = vsub.s32 0, %v739
    %v741 = vrot.slane %v721, %v740
    %v742 = vlaneseq
    %v743 = vshrl.u32 %v742, 7
    %v744 = vsub.s32 0, %v743
    %v745 = vrot.slane %v722, %v744
    %v746 = vlaneseq
    %v747 = vshrl.u32 %v746, 7
    %v748 = vsub.s32 0, %v747
    %v749 = vrot.slane %v723, %v748
    %v750 = vlaneseq
    %v751 = vshrl.u32 %v750, 7
    %v752 = vsub.s32 0, %v751
    %v753 = vrot.slane %v724, %v752
    %v754 = vlaneseq
    %v755 = vshrl.u32 %v754, 7
    %v756 = vsub.s32 0, %v755
    %v757 = vrot.slane %v725, %v756
    %v758 = vmul.f32 %v589, %v729
    %v759 = vmul.f32 %v590, %v733
    %v760 = vmul.f32 %v591, %v737
    %v761 = vmul.f32 %v592, %v741
    %v762 = vmul.f32 %v593, %v745
    %v763 = vmul.f32 %v594, %v749
    %v764 = vmul.f32 %v595, %v753
    %v765 = vmul.f32 %v596, %v757
    %v767 = vlaneseq
    %v768 = vshrl.u32 %v767, 7
    %v769 = vsub.s32 0, %v768
    %v770 = vrot.slane %v531, %v769
    %v771 = vlaneseq
    %v772 = vshrl.u32 %v771, 7
    %v773 = vsub.s32 1, %v772
    %v774 = vrot.slane %v531, %v773
    %v775 = vlaneseq
    %v776 = vshrl.u32 %v775, 7
    %v777 = vsub.s32 2, %v776
    %v778 = vrot.slane %v531, %v777
    %v779 = vlaneseq
    %v780 = vshrl.u32 %v779, 7
    %v781 = vsub.s32 3, %v780
    %v782 = vrot.slane %v531, %v781
    %v783 = vlaneseq
    %v784 = vshrl.u32 %v783, 7
    %v785 = vsub.s32 4, %v784
    %v786 = vrot.slane %v531, %v785
    %v787 = vlaneseq
    %v788 = vshrl.u32 %v787, 7
    %v789 = vsub.s32 5, %v788
    %v790 = vrot.slane %v531, %v789
    %v791 = vlaneseq
    %v792 = vshrl.u32 %v791, 7
    %v793 = vsub.s32 6, %v792
    %v794 = vrot.slane %v531, %v793
    %v795 = vlaneseq
    %v796 = vshrl.u32 %v795, 7
    %v797 = vsub.s32 7, %v796
    %v798 = vrot.slane %v531, %v797
    %v807 = vadd.f32 %v758, %v770
    %v808 = vadd.f32 %v759, %v774
    %v809 = vadd.f32 %v760, %v778
    %v810 = vadd.f32 %v761, %v782
    %v811 = vadd.f32 %v762, %v786
    %v812 = vadd.f32 %v763, %v790
    %v813 = vadd.f32 %v764, %v794
    %v814 = vadd.f32 %v765, %v798
    %v815 = vld [vmem:[#allocation12 + $0x18] sm:$0x3]
    %v816 = vpack.c.bf16 %v807, %v807
    %v817 = vpack.c.bf16 %v808, %v808
    %v818 = vpack.c.bf16 %v809, %v809
    %v819 = vpack.c.bf16 %v810, %v810
    %v820 = vpack.c.bf16 %v811, %v811
    %v821 = vpack.c.bf16 %v812, %v812
    %v822 = vpack.c.bf16 %v813, %v813
    %v823 = vpack.c.bf16 %v814, %v814
    %v824 = vld [vmem:[#allocation6] sm:$0xff]
    %v825 = vld [vmem:[#allocation6 + $0x8] sm:$0xff]
    %v826 = vld [vmem:[#allocation6 + $0x10] sm:$0xff]
    %v827 = vld [vmem:[#allocation6 + $0x18] sm:$0xff]
    %v828 = vld [vmem:[#allocation6 + $0x20] sm:$0xff]
    %v829 = vld [vmem:[#allocation6 + $0x28] sm:$0xff]
    %v830 = vld [vmem:[#allocation6 + $0x30] sm:$0xff]
    %v831 = vld [vmem:[#allocation6 + $0x38] sm:$0xff]
    %v832 = vld [vmem:[#allocation6 + $0x40] sm:$0xff]
    %v833 = vld [vmem:[#allocation6 + $0x48] sm:$0xff]
    %v834 = vld [vmem:[#allocation6 + $0x50] sm:$0xff]
    %v835 = vld [vmem:[#allocation6 + $0x58] sm:$0xff]
    %v836 = vld [vmem:[#allocation6 + $0x60] sm:$0xff]
    %v837 = vld [vmem:[#allocation6 + $0x68] sm:$0xff]
    %v838 = vld [vmem:[#allocation6 + $0x70] sm:$0xff]
    %v839 = vld [vmem:[#allocation6 + $0x78] sm:$0xff]
    %v840 = vld [vmem:[#allocation6 + $0x80] sm:$0xff]
    %v841 = vld [vmem:[#allocation6 + $0x88] sm:$0xff]
    %v842 = vld [vmem:[#allocation6 + $0x90] sm:$0xff]
    %v843 = vld [vmem:[#allocation6 + $0x98] sm:$0xff]
    %v844 = vld [vmem:[#allocation6 + $0xa0] sm:$0xff]
    %v845 = vld [vmem:[#allocation6 + $0xa8] sm:$0xff]
    %v846 = vld [vmem:[#allocation6 + $0xb0] sm:$0xff]
    %v847 = vld [vmem:[#allocation6 + $0xb8] sm:$0xff]
    %v848 = vld [vmem:[#allocation6 + $0xc0] sm:$0xff]
    %v849 = vld [vmem:[#allocation6 + $0xc8] sm:$0xff]
    %v850 = vld [vmem:[#allocation6 + $0xd0] sm:$0xff]
    %v851 = vld [vmem:[#allocation6 + $0xd8] sm:$0xff]
    %v852 = vld [vmem:[#allocation6 + $0xe0] sm:$0xff]
    %v853 = vld [vmem:[#allocation6 + $0xe8] sm:$0xff]
    %v854 = vld [vmem:[#allocation6 + $0xf0] sm:$0xff]
    %v855 = vld [vmem:[#allocation6 + $0xf8] sm:$0xff]
    %v856 = vld [vmem:[#allocation6 + $0x100] sm:$0xff]
    %v857 = vld [vmem:[#allocation6 + $0x108] sm:$0xff]
    %v858 = vld [vmem:[#allocation6 + $0x110] sm:$0xff]
    %v859 = vld [vmem:[#allocation6 + $0x118] sm:$0xff]
    %v860 = vld [vmem:[#allocation6 + $0x120] sm:$0xff]
    %v861 = vld [vmem:[#allocation6 + $0x128] sm:$0xff]
    %v862 = vld [vmem:[#allocation6 + $0x130] sm:$0xff]
    %v863 = vld [vmem:[#allocation6 + $0x138] sm:$0xff]
    %v864 = vld [vmem:[#allocation6 + $0x140] sm:$0xff]
    %v865 = vld [vmem:[#allocation6 + $0x148] sm:$0xff]
    %v866 = vld [vmem:[#allocation6 + $0x150] sm:$0xff]
    %v867 = vld [vmem:[#allocation6 + $0x158] sm:$0xff]
    %v868 = vld [vmem:[#allocation6 + $0x160] sm:$0xff]
    %v869 = vld [vmem:[#allocation6 + $0x168] sm:$0xff]
    %v870 = vld [vmem:[#allocation6 + $0x170] sm:$0xff]
    %v871 = vld [vmem:[#allocation6 + $0x178] sm:$0xff]
    %v872 = vld [vmem:[#allocation6 + $0x180] sm:$0xff]
    %v873 = vld [vmem:[#allocation6 + $0x188] sm:$0xff]
    %v874 = vld [vmem:[#allocation6 + $0x190] sm:$0xff]
    %v875 = vld [vmem:[#allocation6 + $0x198] sm:$0xff]
    %v876 = vld [vmem:[#allocation6 + $0x1a0] sm:$0xff]
    %v877 = vld [vmem:[#allocation6 + $0x1a8] sm:$0xff]
    %v878 = vld [vmem:[#allocation6 + $0x1b0] sm:$0xff]
    %v879 = vld [vmem:[#allocation6 + $0x1b8] sm:$0xff]
    %v880 = vld [vmem:[#allocation6 + $0x1c0] sm:$0xff]
    %v881 = vld [vmem:[#allocation6 + $0x1c8] sm:$0xff]
    %v882 = vld [vmem:[#allocation6 + $0x1d0] sm:$0xff]
    %v883 = vld [vmem:[#allocation6 + $0x1d8] sm:$0xff]
    %v884 = vld [vmem:[#allocation6 + $0x1e0] sm:$0xff]
    %v885 = vld [vmem:[#allocation6 + $0x1e8] sm:$0xff]
    %v886 = vld [vmem:[#allocation6 + $0x1f0] sm:$0xff]
    %v887 = vld [vmem:[#allocation6 + $0x1f8] sm:$0xff]
    %v888 = vld [vmem:[#allocation6 + $0x200] sm:$0xff]
    %v889 = vld [vmem:[#allocation6 + $0x208] sm:$0xff]
    %v890 = vld [vmem:[#allocation6 + $0x210] sm:$0xff]
    %v891 = vld [vmem:[#allocation6 + $0x218] sm:$0xff]
    %v892 = vld [vmem:[#allocation6 + $0x220] sm:$0xff]
    %v893 = vld [vmem:[#allocation6 + $0x228] sm:$0xff]
    %v894 = vld [vmem:[#allocation6 + $0x230] sm:$0xff]
    %v895 = vld [vmem:[#allocation6 + $0x238] sm:$0xff]
    %v896 = vld [vmem:[#allocation6 + $0x240] sm:$0xff]
    %v897 = vld [vmem:[#allocation6 + $0x248] sm:$0xff]
    %v898 = vld [vmem:[#allocation6 + $0x250] sm:$0xff]
    %v899 = vld [vmem:[#allocation6 + $0x258] sm:$0xff]
    %v900 = vld [vmem:[#allocation6 + $0x260] sm:$0xff]
    %v901 = vld [vmem:[#allocation6 + $0x268] sm:$0xff]
    %v902 = vld [vmem:[#allocation6 + $0x270] sm:$0xff]
    %v903 = vld [vmem:[#allocation6 + $0x278] sm:$0xff]
    %v904 = vld [vmem:[#allocation6 + $0x280] sm:$0xff]
    %v905 = vld [vmem:[#allocation6 + $0x288] sm:$0xff]
    %v906 = vld [vmem:[#allocation6 + $0x290] sm:$0xff]
    %v907 = vld [vmem:[#allocation6 + $0x298] sm:$0xff]
    %v908 = vld [vmem:[#allocation6 + $0x2a0] sm:$0xff]
    %v909 = vld [vmem:[#allocation6 + $0x2a8] sm:$0xff]
    %v910 = vld [vmem:[#allocation6 + $0x2b0] sm:$0xff]
    %v911 = vld [vmem:[#allocation6 + $0x2b8] sm:$0xff]
    %v912 = vld [vmem:[#allocation6 + $0x2c0] sm:$0xff]
    %v913 = vld [vmem:[#allocation6 + $0x2c8] sm:$0xff]
    %v914 = vld [vmem:[#allocation6 + $0x2d0] sm:$0xff]
    %v915 = vld [vmem:[#allocation6 + $0x2d8] sm:$0xff]
    %v916 = vld [vmem:[#allocation6 + $0x2e0] sm:$0xff]
    %v917 = vld [vmem:[#allocation6 + $0x2e8] sm:$0xff]
    %v918 = vld [vmem:[#allocation6 + $0x2f0] sm:$0xff]
    %v919 = vld [vmem:[#allocation6 + $0x2f8] sm:$0xff]
    %v920 = vld [vmem:[#allocation6 + $0x300] sm:$0xff]
    %v921 = vld [vmem:[#allocation6 + $0x308] sm:$0xff]
    %v922 = vld [vmem:[#allocation6 + $0x310] sm:$0xff]
    %v923 = vld [vmem:[#allocation6 + $0x318] sm:$0xff]
    %v924 = vld [vmem:[#allocation6 + $0x320] sm:$0xff]
    %v925 = vld [vmem:[#allocation6 + $0x328] sm:$0xff]
    %v926 = vld [vmem:[#allocation6 + $0x330] sm:$0xff]
    %v927 = vld [vmem:[#allocation6 + $0x338] sm:$0xff]
    %v928 = vld [vmem:[#allocation6 + $0x340] sm:$0xff]
    %v929 = vld [vmem:[#allocation6 + $0x348] sm:$0xff]
    %v930 = vld [vmem:[#allocation6 + $0x350] sm:$0xff]
    %v931 = vld [vmem:[#allocation6 + $0x358] sm:$0xff]
    %v932 = vld [vmem:[#allocation6 + $0x360] sm:$0xff]
    %v933 = vld [vmem:[#allocation6 + $0x368] sm:$0xff]
    %v934 = vld [vmem:[#allocation6 + $0x370] sm:$0xff]
    %v935 = vld [vmem:[#allocation6 + $0x378] sm:$0xff]
    %v936 = vld [vmem:[#allocation6 + $0x380] sm:$0xff]
    %v937 = vld [vmem:[#allocation6 + $0x388] sm:$0xff]
    %v938 = vld [vmem:[#allocation6 + $0x390] sm:$0xff]
    %v939 = vld [vmem:[#allocation6 + $0x398] sm:$0xff]
    %v940 = vld [vmem:[#allocation6 + $0x3a0] sm:$0xff]
    %v941 = vld [vmem:[#allocation6 + $0x3a8] sm:$0xff]
    %v942 = vld [vmem:[#allocation6 + $0x3b0] sm:$0xff]
    %v943 = vld [vmem:[#allocation6 + $0x3b8] sm:$0xff]
    %v944 = vld [vmem:[#allocation6 + $0x3c0] sm:$0xff]
    %v945 = vld [vmem:[#allocation6 + $0x3c8] sm:$0xff]
    %v946 = vld [vmem:[#allocation6 + $0x3d0] sm:$0xff]
    %v947 = vld [vmem:[#allocation6 + $0x3d8] sm:$0xff]
    %v948 = vld [vmem:[#allocation6 + $0x3e0] sm:$0xff]
    %v949 = vld [vmem:[#allocation6 + $0x3e8] sm:$0xff]
    %v950 = vld [vmem:[#allocation6 + $0x3f0] sm:$0xff]
    %v951 = vld [vmem:[#allocation6 + $0x3f8] sm:$0xff]
    %v953 = vlaneseq
    %v954 = vshrl.u32 %v953, 7
    %v955 = vsub.s32 0, %v954
    %v956 = vrot.slane %v815, %v955
    %v957 = vlaneseq
    %v958 = vshrl.u32 %v957, 7
    %v959 = vsub.s32 1, %v958
    %v960 = vrot.slane %v815, %v959
    %v1091 = vunpack.c.l.b16 %v824
    %v1092 = vunpack.c.h.b16 %v824
    %v1093 = vunpack.c.l.b16 %v825
    %v1094 = vunpack.c.h.b16 %v825
    %v1095 = vunpack.c.l.b16 %v826
    %v1096 = vunpack.c.h.b16 %v826
    %v1097 = vunpack.c.l.b16 %v827
    %v1098 = vunpack.c.h.b16 %v827
    %v1099 = vunpack.c.l.b16 %v828
    %v1100 = vunpack.c.h.b16 %v828
    %v1101 = vunpack.c.l.b16 %v829
    %v1102 = vunpack.c.h.b16 %v829
    %v1103 = vunpack.c.l.b16 %v830
    %v1104 = vunpack.c.h.b16 %v830
    %v1105 = vunpack.c.l.b16 %v831
    %v1106 = vunpack.c.h.b16 %v831
    %v1107 = vunpack.c.l.b16 %v832
    %v1108 = vunpack.c.h.b16 %v832
    %v1109 = vunpack.c.l.b16 %v833
    %v1110 = vunpack.c.h.b16 %v833
    %v1111 = vunpack.c.l.b16 %v834
    %v1112 = vunpack.c.h.b16 %v834
    %v1113 = vunpack.c.l.b16 %v835
    %v1114 = vunpack.c.h.b16 %v835
    %v1115 = vunpack.c.l.b16 %v836
    %v1116 = vunpack.c.h.b16 %v836
    %v1117 = vunpack.c.l.b16 %v837
    %v1118 = vunpack.c.h.b16 %v837
    %v1119 = vunpack.c.l.b16 %v838
    %v1120 = vunpack.c.h.b16 %v838
    %v1121 = vunpack.c.l.b16 %v839
    %v1122 = vunpack.c.h.b16 %v839
    %v1123 = vunpack.c.l.b16 %v840
    %v1124 = vunpack.c.h.b16 %v840
    %v1125 = vunpack.c.l.b16 %v841
    %v1126 = vunpack.c.h.b16 %v841
    %v1127 = vunpack.c.l.b16 %v842
    %v1128 = vunpack.c.h.b16 %v842
    %v1129 = vunpack.c.l.b16 %v843
    %v1130 = vunpack.c.h.b16 %v843
    %v1131 = vunpack.c.l.b16 %v844
    %v1132 = vunpack.c.h.b16 %v844
    %v1133 = vunpack.c.l.b16 %v845
    %v1134 = vunpack.c.h.b16 %v845
    %v1135 = vunpack.c.l.b16 %v846
    %v1136 = vunpack.c.h.b16 %v846
    %v1137 = vunpack.c.l.b16 %v847
    %v1138 = vunpack.c.h.b16 %v847
    %v1139 = vunpack.c.l.b16 %v848
    %v1140 = vunpack.c.h.b16 %v848
    %v1141 = vunpack.c.l.b16 %v849
    %v1142 = vunpack.c.h.b16 %v849
    %v1143 = vunpack.c.l.b16 %v850
    %v1144 = vunpack.c.h.b16 %v850
    %v1145 = vunpack.c.l.b16 %v851
    %v1146 = vunpack.c.h.b16 %v851
    %v1147 = vunpack.c.l.b16 %v852
    %v1148 = vunpack.c.h.b16 %v852
    %v1149 = vunpack.c.l.b16 %v853
    %v1150 = vunpack.c.h.b16 %v853
    %v1151 = vunpack.c.l.b16 %v854
    %v1152 = vunpack.c.h.b16 %v854
    %v1153 = vunpack.c.l.b16 %v855
    %v1154 = vunpack.c.h.b16 %v855
    %v1155 = vunpack.c.l.b16 %v856
    %v1156 = vunpack.c.h.b16 %v856
    %v1157 = vunpack.c.l.b16 %v857
    %v1158 = vunpack.c.h.b16 %v857
    %v1159 = vunpack.c.l.b16 %v858
    %v1160 = vunpack.c.h.b16 %v858
    %v1161 = vunpack.c.l.b16 %v859
    %v1162 = vunpack.c.h.b16 %v859
    %v1163 = vunpack.c.l.b16 %v860
    %v1164 = vunpack.c.h.b16 %v860
    %v1165 = vunpack.c.l.b16 %v861
    %v1166 = vunpack.c.h.b16 %v861
    %v1167 = vunpack.c.l.b16 %v862
    %v1168 = vunpack.c.h.b16 %v862
    %v1169 = vunpack.c.l.b16 %v863
    %v1170 = vunpack.c.h.b16 %v863
    %v1171 = vunpack.c.l.b16 %v864
    %v1172 = vunpack.c.h.b16 %v864
    %v1173 = vunpack.c.l.b16 %v865
    %v1174 = vunpack.c.h.b16 %v865
    %v1175 = vunpack.c.l.b16 %v866
    %v1176 = vunpack.c.h.b16 %v866
    %v1177 = vunpack.c.l.b16 %v867
    %v1178 = vunpack.c.h.b16 %v867
    %v1179 = vunpack.c.l.b16 %v868
    %v1180 = vunpack.c.h.b16 %v868
    %v1181 = vunpack.c.l.b16 %v869
    %v1182 = vunpack.c.h.b16 %v869
    %v1183 = vunpack.c.l.b16 %v870
    %v1184 = vunpack.c.h.b16 %v870
    %v1185 = vunpack.c.l.b16 %v871
    %v1186 = vunpack.c.h.b16 %v871
    %v1187 = vunpack.c.l.b16 %v872
    %v1188 = vunpack.c.h.b16 %v872
    %v1189 = vunpack.c.l.b16 %v873
    %v1190 = vunpack.c.h.b16 %v873
    %v1191 = vunpack.c.l.b16 %v874
    %v1192 = vunpack.c.h.b16 %v874
    %v1193 = vunpack.c.l.b16 %v875
    %v1194 = vunpack.c.h.b16 %v875
    %v1195 = vunpack.c.l.b16 %v876
    %v1196 = vunpack.c.h.b16 %v876
    %v1197 = vunpack.c.l.b16 %v877
    %v1198 = vunpack.c.h.b16 %v877
    %v1199 = vunpack.c.l.b16 %v878
    %v1200 = vunpack.c.h.b16 %v878
    %v1201 = vunpack.c.l.b16 %v879
    %v1202 = vunpack.c.h.b16 %v879
    %v1203 = vunpack.c.l.b16 %v880
    %v1204 = vunpack.c.h.b16 %v880
    %v1205 = vunpack.c.l.b16 %v881
    %v1206 = vunpack.c.h.b16 %v881
    %v1207 = vunpack.c.l.b16 %v882
    %v1208 = vunpack.c.h.b16 %v882
    %v1209 = vunpack.c.l.b16 %v883
    %v1210 = vunpack.c.h.b16 %v883
    %v1211 = vunpack.c.l.b16 %v884
    %v1212 = vunpack.c.h.b16 %v884
    %v1213 = vunpack.c.l.b16 %v885
    %v1214 = vunpack.c.h.b16 %v885
    %v1215 = vunpack.c.l.b16 %v886
    %v1216 = vunpack.c.h.b16 %v886
    %v1217 = vunpack.c.l.b16 %v887
    %v1218 = vunpack.c.h.b16 %v887
    %v1219 = vunpack.c.l.b16 %v888
    %v1220 = vunpack.c.h.b16 %v888
    %v1221 = vunpack.c.l.b16 %v889
    %v1222 = vunpack.c.h.b16 %v889
    %v1223 = vunpack.c.l.b16 %v890
    %v1224 = vunpack.c.h.b16 %v890
    %v1225 = vunpack.c.l.b16 %v891
    %v1226 = vunpack.c.h.b16 %v891
    %v1227 = vunpack.c.l.b16 %v892
    %v1228 = vunpack.c.h.b16 %v892
    %v1229 = vunpack.c.l.b16 %v893
    %v1230 = vunpack.c.h.b16 %v893
    %v1231 = vunpack.c.l.b16 %v894
    %v1232 = vunpack.c.h.b16 %v894
    %v1233 = vunpack.c.l.b16 %v895
    %v1234 = vunpack.c.h.b16 %v895
    %v1235 = vunpack.c.l.b16 %v896
    %v1236 = vunpack.c.h.b16 %v896
    %v1237 = vunpack.c.l.b16 %v897
    %v1238 = vunpack.c.h.b16 %v897
    %v1239 = vunpack.c.l.b16 %v898
    %v1240 = vunpack.c.h.b16 %v898
    %v1241 = vunpack.c.l.b16 %v899
    %v1242 = vunpack.c.h.b16 %v899
    %v1243 = vunpack.c.l.b16 %v900
    %v1244 = vunpack.c.h.b16 %v900
    %v1245 = vunpack.c.l.b16 %v901
    %v1246 = vunpack.c.h.b16 %v901
    %v1247 = vunpack.c.l.b16 %v902
    %v1248 = vunpack.c.h.b16 %v902
    %v1249 = vunpack.c.l.b16 %v903
    %v1250 = vunpack.c.h.b16 %v903
    %v1251 = vunpack.c.l.b16 %v904
    %v1252 = vunpack.c.h.b16 %v904
    %v1253 = vunpack.c.l.b16 %v905
    %v1254 = vunpack.c.h.b16 %v905
    %v1255 = vunpack.c.l.b16 %v906
    %v1256 = vunpack.c.h.b16 %v906
    %v1257 = vunpack.c.l.b16 %v907
    %v1258 = vunpack.c.h.b16 %v907
    %v1259 = vunpack.c.l.b16 %v908
    %v1260 = vunpack.c.h.b16 %v908
    %v1261 = vunpack.c.l.b16 %v909
    %v1262 = vunpack.c.h.b16 %v909
    %v1263 = vunpack.c.l.b16 %v910
    %v1264 = vunpack.c.h.b16 %v910
    %v1265 = vunpack.c.l.b16 %v911
    %v1266 = vunpack.c.h.b16 %v911
    %v1267 = vunpack.c.l.b16 %v912
    %v1268 = vunpack.c.h.b16 %v912
    %v1269 = vunpack.c.l.b16 %v913
    %v1270 = vunpack.c.h.b16 %v913
    %v1271 = vunpack.c.l.b16 %v914
    %v1272 = vunpack.c.h.b16 %v914
    %v1273 = vunpack.c.l.b16 %v915
    %v1274 = vunpack.c.h.b16 %v915
    %v1275 = vunpack.c.l.b16 %v916
    %v1276 = vunpack.c.h.b16 %v916
    %v1277 = vunpack.c.l.b16 %v917
    %v1278 = vunpack.c.h.b16 %v917
    %v1279 = vunpack.c.l.b16 %v918
    %v1280 = vunpack.c.h.b16 %v918
    %v1281 = vunpack.c.l.b16 %v919
    %v1282 = vunpack.c.h.b16 %v919
    %v1283 = vunpack.c.l.b16 %v920
    %v1284 = vunpack.c.h.b16 %v920
    %v1285 = vunpack.c.l.b16 %v921
    %v1286 = vunpack.c.h.b16 %v921
    %v1287 = vunpack.c.l.b16 %v922
    %v1288 = vunpack.c.h.b16 %v922
    %v1289 = vunpack.c.l.b16 %v923
    %v1290 = vunpack.c.h.b16 %v923
    %v1291 = vunpack.c.l.b16 %v924
    %v1292 = vunpack.c.h.b16 %v924
    %v1293 = vunpack.c.l.b16 %v925
    %v1294 = vunpack.c.h.b16 %v925
    %v1295 = vunpack.c.l.b16 %v926
    %v1296 = vunpack.c.h.b16 %v926
    %v1297 = vunpack.c.l.b16 %v927
    %v1298 = vunpack.c.h.b16 %v927
    %v1299 = vunpack.c.l.b16 %v928
    %v1300 = vunpack.c.h.b16 %v928
    %v1301 = vunpack.c.l.b16 %v929
    %v1302 = vunpack.c.h.b16 %v929
    %v1303 = vunpack.c.l.b16 %v930
    %v1304 = vunpack.c.h.b16 %v930
    %v1305 = vunpack.c.l.b16 %v931
    %v1306 = vunpack.c.h.b16 %v931
    %v1307 = vunpack.c.l.b16 %v932
    %v1308 = vunpack.c.h.b16 %v932
    %v1309 = vunpack.c.l.b16 %v933
    %v1310 = vunpack.c.h.b16 %v933
    %v1311 = vunpack.c.l.b16 %v934
    %v1312 = vunpack.c.h.b16 %v934
    %v1313 = vunpack.c.l.b16 %v935
    %v1314 = vunpack.c.h.b16 %v935
    %v1315 = vunpack.c.l.b16 %v936
    %v1316 = vunpack.c.h.b16 %v936
    %v1317 = vunpack.c.l.b16 %v937
    %v1318 = vunpack.c.h.b16 %v937
    %v1319 = vunpack.c.l.b16 %v938
    %v1320 = vunpack.c.h.b16 %v938
    %v1321 = vunpack.c.l.b16 %v939
    %v1322 = vunpack.c.h.b16 %v939
    %v1323 = vunpack.c.l.b16 %v940
    %v1324 = vunpack.c.h.b16 %v940
    %v1325 = vunpack.c.l.b16 %v941
    %v1326 = vunpack.c.h.b16 %v941
    %v1327 = vunpack.c.l.b16 %v942
    %v1328 = vunpack.c.h.b16 %v942
    %v1329 = vunpack.c.l.b16 %v943
    %v1330 = vunpack.c.h.b16 %v943
    %v1331 = vunpack.c.l.b16 %v944
    %v1332 = vunpack.c.h.b16 %v944
    %v1333 = vunpack.c.l.b16 %v945
    %v1334 = vunpack.c.h.b16 %v945
    %v1335 = vunpack.c.l.b16 %v946
    %v1336 = vunpack.c.h.b16 %v946
    %v1337 = vunpack.c.l.b16 %v947
    %v1338 = vunpack.c.h.b16 %v947
    %v1339 = vunpack.c.l.b16 %v948
    %v1340 = vunpack.c.h.b16 %v948
    %v1341 = vunpack.c.l.b16 %v949
    %v1342 = vunpack.c.h.b16 %v949
    %v1343 = vunpack.c.l.b16 %v950
    %v1344 = vunpack.c.h.b16 %v950
    %v1345 = vunpack.c.l.b16 %v951
    %v1346 = vunpack.c.h.b16 %v951
    %v1347 = vpack.c.b16 %v1093, %v1091
    %v1348 = vpack.c.b16 %v1094, %v1092
    %v1349 = vpack.c.b16 %v1097, %v1095
    %v1350 = vpack.c.b16 %v1098, %v1096
    %v1351 = vpack.c.b16 %v1101, %v1099
    %v1352 = vpack.c.b16 %v1102, %v1100
    %v1353 = vpack.c.b16 %v1105, %v1103
    %v1354 = vpack.c.b16 %v1106, %v1104
    %v1355 = vpack.c.b16 %v1109, %v1107
    %v1356 = vpack.c.b16 %v1110, %v1108
    %v1357 = vpack.c.b16 %v1113, %v1111
    %v1358 = vpack.c.b16 %v1114, %v1112
    %v1359 = vpack.c.b16 %v1117, %v1115
    %v1360 = vpack.c.b16 %v1118, %v1116
    %v1361 = vpack.c.b16 %v1121, %v1119
    %v1362 = vpack.c.b16 %v1122, %v1120
    %v1363 = vpack.c.b16 %v1125, %v1123
    %v1364 = vpack.c.b16 %v1126, %v1124
    %v1365 = vpack.c.b16 %v1129, %v1127
    %v1366 = vpack.c.b16 %v1130, %v1128
    %v1367 = vpack.c.b16 %v1133, %v1131
    %v1368 = vpack.c.b16 %v1134, %v1132
    %v1369 = vpack.c.b16 %v1137, %v1135
    %v1370 = vpack.c.b16 %v1138, %v1136
    %v1371 = vpack.c.b16 %v1141, %v1139
    %v1372 = vpack.c.b16 %v1142, %v1140
    %v1373 = vpack.c.b16 %v1145, %v1143
    %v1374 = vpack.c.b16 %v1146, %v1144
    %v1375 = vpack.c.b16 %v1149, %v1147
    %v1376 = vpack.c.b16 %v1150, %v1148
    %v1377 = vpack.c.b16 %v1153, %v1151
    %v1378 = vpack.c.b16 %v1154, %v1152
    %v1379 = vpack.c.b16 %v1157, %v1155
    %v1380 = vpack.c.b16 %v1158, %v1156
    %v1381 = vpack.c.b16 %v1161, %v1159
    %v1382 = vpack.c.b16 %v1162, %v1160
    %v1383 = vpack.c.b16 %v1165, %v1163
    %v1384 = vpack.c.b16 %v1166, %v1164
    %v1385 = vpack.c.b16 %v1169, %v1167
    %v1386 = vpack.c.b16 %v1170, %v1168
    %v1387 = vpack.c.b16 %v1173, %v1171
    %v1388 = vpack.c.b16 %v1174, %v1172
    %v1389 = vpack.c.b16 %v1177, %v1175
    %v1390 = vpack.c.b16 %v1178, %v1176
    %v1391 = vpack.c.b16 %v1181, %v1179
    %v1392 = vpack.c.b16 %v1182, %v1180
    %v1393 = vpack.c.b16 %v1185, %v1183
    %v1394 = vpack.c.b16 %v1186, %v1184
    %v1395 = vpack.c.b16 %v1189, %v1187
    %v1396 = vpack.c.b16 %v1190, %v1188
    %v1397 = vpack.c.b16 %v1193, %v1191
    %v1398 = vpack.c.b16 %v1194, %v1192
    %v1399 = vpack.c.b16 %v1197, %v1195
    %v1400 = vpack.c.b16 %v1198, %v1196
    %v1401 = vpack.c.b16 %v1201, %v1199
    %v1402 = vpack.c.b16 %v1202, %v1200
    %v1403 = vpack.c.b16 %v1205, %v1203
    %v1404 = vpack.c.b16 %v1206, %v1204
    %v1405 = vpack.c.b16 %v1209, %v1207
    %v1406 = vpack.c.b16 %v1210, %v1208
    %v1407 = vpack.c.b16 %v1213, %v1211
    %v1408 = vpack.c.b16 %v1214, %v1212
    %v1409 = vpack.c.b16 %v1217, %v1215
    %v1410 = vpack.c.b16 %v1218, %v1216
    %v1411 = vpack.c.b16 %v1221, %v1219
    %v1412 = vpack.c.b16 %v1222, %v1220
    %v1413 = vpack.c.b16 %v1225, %v1223
    %v1414 = vpack.c.b16 %v1226, %v1224
    %v1415 = vpack.c.b16 %v1229, %v1227
    %v1416 = vpack.c.b16 %v1230, %v1228
    %v1417 = vpack.c.b16 %v1233, %v1231
    %v1418 = vpack.c.b16 %v1234, %v1232
    %v1419 = vpack.c.b16 %v1237, %v1235
    %v1420 = vpack.c.b16 %v1238, %v1236
    %v1421 = vpack.c.b16 %v1241, %v1239
    %v1422 = vpack.c.b16 %v1242, %v1240
    %v1423 = vpack.c.b16 %v1245, %v1243
    %v1424 = vpack.c.b16 %v1246, %v1244
    %v1425 = vpack.c.b16 %v1249, %v1247
    %v1426 = vpack.c.b16 %v1250, %v1248
    %v1427 = vpack.c.b16 %v1253, %v1251
    %v1428 = vpack.c.b16 %v1254, %v1252
    %v1429 = vpack.c.b16 %v1257, %v1255
    %v1430 = vpack.c.b16 %v1258, %v1256
    %v1431 = vpack.c.b16 %v1261, %v1259
    %v1432 = vpack.c.b16 %v1262, %v1260
    %v1433 = vpack.c.b16 %v1265, %v1263
    %v1434 = vpack.c.b16 %v1266, %v1264
    %v1435 = vpack.c.b16 %v1269, %v1267
    %v1436 = vpack.c.b16 %v1270, %v1268
    %v1437 = vpack.c.b16 %v1273, %v1271
    %v1438 = vpack.c.b16 %v1274, %v1272
    %v1439 = vpack.c.b16 %v1277, %v1275
    %v1440 = vpack.c.b16 %v1278, %v1276
    %v1441 = vpack.c.b16 %v1281, %v1279
    %v1442 = vpack.c.b16 %v1282, %v1280
    %v1443 = vpack.c.b16 %v1285, %v1283
    %v1444 = vpack.c.b16 %v1286, %v1284
    %v1445 = vpack.c.b16 %v1289, %v1287
    %v1446 = vpack.c.b16 %v1290, %v1288
    %v1447 = vpack.c.b16 %v1293, %v1291
    %v1448 = vpack.c.b16 %v1294, %v1292
    %v1449 = vpack.c.b16 %v1297, %v1295
    %v1450 = vpack.c.b16 %v1298, %v1296
    %v1451 = vpack.c.b16 %v1301, %v1299
    %v1452 = vpack.c.b16 %v1302, %v1300
    %v1453 = vpack.c.b16 %v1305, %v1303
    %v1454 = vpack.c.b16 %v1306, %v1304
    %v1455 = vpack.c.b16 %v1309, %v1307
    %v1456 = vpack.c.b16 %v1310, %v1308
    %v1457 = vpack.c.b16 %v1313, %v1311
    %v1458 = vpack.c.b16 %v1314, %v1312
    %v1459 = vpack.c.b16 %v1317, %v1315
    %v1460 = vpack.c.b16 %v1318, %v1316
    %v1461 = vpack.c.b16 %v1321, %v1319
    %v1462 = vpack.c.b16 %v1322, %v1320
    %v1463 = vpack.c.b16 %v1325, %v1323
    %v1464 = vpack.c.b16 %v1326, %v1324
    %v1465 = vpack.c.b16 %v1329, %v1327
    %v1466 = vpack.c.b16 %v1330, %v1328
    %v1467 = vpack.c.b16 %v1333, %v1331
    %v1468 = vpack.c.b16 %v1334, %v1332
    %v1469 = vpack.c.b16 %v1337, %v1335
    %v1470 = vpack.c.b16 %v1338, %v1336
    %v1471 = vpack.c.b16 %v1341, %v1339
    %v1472 = vpack.c.b16 %v1342, %v1340
    %v1473 = vpack.c.b16 %v1345, %v1343
    %v1474 = vpack.c.b16 %v1346, %v1344
    %1603 = vmatprep.subr.bf16.mxu0 %v1362
    %1604 = vmatpush1.bf16.msra.mxu0 %v1361
    %1605 = vmatprep.subr.bf16.mxu0 %v1360
    %1606 = vmatpush1.bf16.msra.mxu0 %v1359
    %1607 = vmatprep.subr.bf16.mxu0 %v1358
    %1608 = vmatpush1.bf16.msra.mxu0 %v1357
    %1609 = vmatprep.subr.bf16.mxu0 %v1356
    %1610 = vmatpush1.bf16.msra.mxu0 %v1355
    %1611 = vmatprep.subr.bf16.mxu0 %v1354
    %1612 = vmatpush1.bf16.msra.mxu0 %v1353
    %1613 = vmatprep.subr.bf16.mxu0 %v1352
    %1614 = vmatpush1.bf16.msra.mxu0 %v1351
    %1615 = vmatprep.subr.bf16.mxu0 %v1350
    %1616 = vmatpush1.bf16.msra.mxu0 %v1349
    %1617 = vmatprep.subr.bf16.mxu0 %v1348
    %1618 = vmatpush1.bf16.msra.mxu0 %v1347
    %1619 = vmatprep.subr.bf16.mxu0 %v1378
    %1620 = vmatpush2.bf16.msra.mxu0 %v1377
    %1621 = vmatprep.subr.bf16.mxu0 %v1376
    %1622 = vmatpush2.bf16.msra.mxu0 %v1375
    %1623 = vmatprep.subr.bf16.mxu0 %v1374
    %1624 = vmatpush2.bf16.msra.mxu0 %v1373
    %1625 = vmatprep.subr.bf16.mxu0 %v1372
    %1626 = vmatpush2.bf16.msra.mxu0 %v1371
    %1627 = vmatprep.subr.bf16.mxu0 %v1370
    %1628 = vmatpush2.bf16.msra.mxu0 %v1369
    %1629 = vmatprep.subr.bf16.mxu0 %v1368
    %1630 = vmatpush2.bf16.msra.mxu0 %v1367
    %1631 = vmatprep.subr.bf16.mxu0 %v1366
    %1632 = vmatpush2.bf16.msra.mxu0 %v1365
    %1633 = vmatprep.subr.bf16.mxu0 %v1364
    %1634 = vmatpush2.bf16.msra.mxu0 %v1363
    %1635 = vmatprep.mubr.bf16.mxu0 %v817
    %1636 = vmatmul.mubr.bf16.gmra.mxu0 %v816
    %v1637 = vpop.f32.mrf.mxu0
    %v1638 = vadd.f32 %v956, %v1637
    %v1639 = vpop.f32.mrf.mxu0
    %v1640 = vadd.f32 %v960, %v1639
    %v1641 = vpop.f32.mrf.mxu0
    %v1642 = vpop.f32.mrf.mxu0
    %1643 = vdwg.mxu0
    %1644 = vmatprep.subr.bf16.mxu0 %v1394
    %1645 = vmatpush1.bf16.msra.mxu0 %v1393
    %1646 = vmatprep.subr.bf16.mxu0 %v1392
    %1647 = vmatpush1.bf16.msra.mxu0 %v1391
    %1648 = vmatprep.subr.bf16.mxu0 %v1390
    %1649 = vmatpush1.bf16.msra.mxu0 %v1389
    %1650 = vmatprep.subr.bf16.mxu0 %v1388
    %1651 = vmatpush1.bf16.msra.mxu0 %v1387
    %1652 = vmatprep.subr.bf16.mxu0 %v1386
    %1653 = vmatpush1.bf16.msra.mxu0 %v1385
    %1654 = vmatprep.subr.bf16.mxu0 %v1384
    %1655 = vmatpush1.bf16.msra.mxu0 %v1383
    %1656 = vmatprep.subr.bf16.mxu0 %v1382
    %1657 = vmatpush1.bf16.msra.mxu0 %v1381
    %1658 = vmatprep.subr.bf16.mxu0 %v1380
    %1659 = vmatpush1.bf16.msra.mxu0 %v1379
    %1660 = vmatprep.subr.bf16.mxu0 %v1410
    %1661 = vmatpush2.bf16.msra.mxu0 %v1409
    %1662 = vmatprep.subr.bf16.mxu0 %v1408
    %1663 = vmatpush2.bf16.msra.mxu0 %v1407
    %1664 = vmatprep.subr.bf16.mxu0 %v1406
    %1665 = vmatpush2.bf16.msra.mxu0 %v1405
    %1666 = vmatprep.subr.bf16.mxu0 %v1404
    %1667 = vmatpush2.bf16.msra.mxu0 %v1403
    %1668 = vmatprep.subr.bf16.mxu0 %v1402
    %1669 = vmatpush2.bf16.msra.mxu0 %v1401
    %1670 = vmatprep.subr.bf16.mxu0 %v1400
    %1671 = vmatpush2.bf16.msra.mxu0 %v1399
    %1672 = vmatprep.subr.bf16.mxu0 %v1398
    %1673 = vmatpush2.bf16.msra.mxu0 %v1397
    %1674 = vmatprep.subr.bf16.mxu0 %v1396
    %1675 = vmatpush2.bf16.msra.mxu0 %v1395
    %1676 = vmatprep.mubr.bf16.mxu0 %v819
    %1677 = vmatmul.mubr.bf16.gmra.mxu0 %v818
    %v1678 = vpop.f32.mrf.mxu0
    %v1679 = vadd.f32 %v1638, %v1678
    %v1680 = vpop.f32.mrf.mxu0
    %v1681 = vadd.f32 %v1640, %v1680
    %v1682 = vpop.f32.mrf.mxu0
    %v1683 = vpop.f32.mrf.mxu0
    %1684 = vdwg.mxu0
    %1685 = vmatprep.subr.bf16.mxu0 %v1426
    %1686 = vmatpush1.bf16.msra.mxu0 %v1425
    %1687 = vmatprep.subr.bf16.mxu0 %v1424
    %1688 = vmatpush1.bf16.msra.mxu0 %v1423
    %1689 = vmatprep.subr.bf16.mxu0 %v1422
    %1690 = vmatpush1.bf16.msra.mxu0 %v1421
    %1691 = vmatprep.subr.bf16.mxu0 %v1420
    %1692 = vmatpush1.bf16.msra.mxu0 %v1419
    %1693 = vmatprep.subr.bf16.mxu0 %v1418
    %1694 = vmatpush1.bf16.msra.mxu0 %v1417
    %1695 = vmatprep.subr.bf16.mxu0 %v1416
    %1696 = vmatpush1.bf16.msra.mxu0 %v1415
    %1697 = vmatprep.subr.bf16.mxu0 %v1414
    %1698 = vmatpush1.bf16.msra.mxu0 %v1413
    %1699 = vmatprep.subr.bf16.mxu0 %v1412
    %1700 = vmatpush1.bf16.msra.mxu0 %v1411
    %1701 = vmatprep.subr.bf16.mxu0 %v1442
    %1702 = vmatpush2.bf16.msra.mxu0 %v1441
    %1703 = vmatprep.subr.bf16.mxu0 %v1440
    %1704 = vmatpush2.bf16.msra.mxu0 %v1439
    %1705 = vmatprep.subr.bf16.mxu0 %v1438
    %1706 = vmatpush2.bf16.msra.mxu0 %v1437
    %1707 = vmatprep.subr.bf16.mxu0 %v1436
    %1708 = vmatpush2.bf16.msra.mxu0 %v1435
    %1709 = vmatprep.subr.bf16.mxu0 %v1434
    %1710 = vmatpush2.bf16.msra.mxu0 %v1433
    %1711 = vmatprep.subr.bf16.mxu0 %v1432
    %1712 = vmatpush2.bf16.msra.mxu0 %v1431
    %1713 = vmatprep.subr.bf16.mxu0 %v1430
    %1714 = vmatpush2.bf16.msra.mxu0 %v1429
    %1715 = vmatprep.subr.bf16.mxu0 %v1428
    %1716 = vmatpush2.bf16.msra.mxu0 %v1427
    %1717 = vmatprep.mubr.bf16.mxu0 %v821
    %1718 = vmatmul.mubr.bf16.gmra.mxu0 %v820
    %v1719 = vpop.f32.mrf.mxu0
    %v1720 = vadd.f32 %v1679, %v1719
    %v1721 = vpop.f32.mrf.mxu0
    %v1722 = vadd.f32 %v1681, %v1721
    %v1723 = vpop.f32.mrf.mxu0
    %v1724 = vpop.f32.mrf.mxu0
    %1725 = vdwg.mxu0
    %1726 = vmatprep.subr.bf16.mxu0 %v1458
    %1727 = vmatpush1.bf16.msra.mxu0 %v1457
    %1728 = vmatprep.subr.bf16.mxu0 %v1456
    %1729 = vmatpush1.bf16.msra.mxu0 %v1455
    %1730 = vmatprep.subr.bf16.mxu0 %v1454
    %1731 = vmatpush1.bf16.msra.mxu0 %v1453
    %1732 = vmatprep.subr.bf16.mxu0 %v1452
    %1733 = vmatpush1.bf16.msra.mxu0 %v1451
    %1734 = vmatprep.subr.bf16.mxu0 %v1450
    %1735 = vmatpush1.bf16.msra.mxu0 %v1449
    %1736 = vmatprep.subr.bf16.mxu0 %v1448
    %1737 = vmatpush1.bf16.msra.mxu0 %v1447
    %1738 = vmatprep.subr.bf16.mxu0 %v1446
    %1739 = vmatpush1.bf16.msra.mxu0 %v1445
    %1740 = vmatprep.subr.bf16.mxu0 %v1444
    %1741 = vmatpush1.bf16.msra.mxu0 %v1443
    %1742 = vmatprep.subr.bf16.mxu0 %v1474
    %1743 = vmatpush2.bf16.msra.mxu0 %v1473
    %1744 = vmatprep.subr.bf16.mxu0 %v1472
    %1745 = vmatpush2.bf16.msra.mxu0 %v1471
    %1746 = vmatprep.subr.bf16.mxu0 %v1470
    %1747 = vmatpush2.bf16.msra.mxu0 %v1469
    %1748 = vmatprep.subr.bf16.mxu0 %v1468
    %1749 = vmatpush2.bf16.msra.mxu0 %v1467
    %1750 = vmatprep.subr.bf16.mxu0 %v1466
    %1751 = vmatpush2.bf16.msra.mxu0 %v1465
    %1752 = vmatprep.subr.bf16.mxu0 %v1464
    %1753 = vmatpush2.bf16.msra.mxu0 %v1463
    %1754 = vmatprep.subr.bf16.mxu0 %v1462
    %1755 = vmatpush2.bf16.msra.mxu0 %v1461
    %1756 = vmatprep.subr.bf16.mxu0 %v1460
    %1757 = vmatpush2.bf16.msra.mxu0 %v1459
    %1758 = vmatprep.mubr.bf16.mxu0 %v823
    %1759 = vmatmul.mubr.bf16.gmra.mxu0 %v822
    %v1760 = vpop.f32.mrf.mxu0
    %v1761 = vadd.f32 %v1720, %v1760
    %v1762 = vpop.f32.mrf.mxu0
    %v1763 = vadd.f32 %v1722, %v1762
    %v1764 = vpop.f32.mrf.mxu0
    %v1765 = vpop.f32.mrf.mxu0
    %1766 = vdwg.mxu0
    %v1767 = vmax.f32 %v1761, 0.0
    %v1768 = vmax.f32 %v1763, 0.0
    %v1769 = vld [vmem:[#allocation12 + $0x1a] sm:$0x3]
    %v1770 = vld [vmem:[#allocation12 + $0x1c] sm:$0x3]
    %v1771 = vrot.slane %v1767, 4
    %v1772 = vadd.f32 %v1767, %v1771
    %v1773 = vrot.slane %v1772, 2
    %v1774 = vadd.f32 %v1772, %v1773
    %v1775 = vrot.slane %v1774, 1
    %v1776 = vadd.f32 %v1774, %v1775
    %v1777 = vrot.slane %v1768, 4
    %v1778 = vadd.f32 %v1768, %v1777
    %v1779 = vrot.slane %v1778, 2
    %v1780 = vadd.f32 %v1778, %v1779
    %v1781 = vrot.slane %v1780, 1
    %v1782 = vadd.f32 %v1780, %v1781
    %v1783 = vmul.f32 %v1776, %v580
    %v1784 = vmul.f32 %v1782, %v580
    %v1785 = vsub.f32 %v1767, %v1783
    %v1786 = vsub.f32 %v1768, %v1784
    %v1787 = vmul.f32 %v1785, %v1785
    %v1788 = vmul.f32 %v1786, %v1786
    %v1789 = vrot.slane %v1787, 4
    %v1790 = vadd.f32 %v1787, %v1789
    %v1791 = vrot.slane %v1790, 2
    %v1792 = vadd.f32 %v1790, %v1791
    %v1793 = vrot.slane %v1792, 1
    %v1794 = vadd.f32 %v1792, %v1793
    %v1795 = vrot.slane %v1788, 4
    %v1796 = vadd.f32 %v1788, %v1795
    %v1797 = vrot.slane %v1796, 2
    %v1798 = vadd.f32 %v1796, %v1797
    %v1799 = vrot.slane %v1798, 1
    %v1800 = vadd.f32 %v1798, %v1799
    %v1801 = vmul.f32 %v1794, %v580
    %v1802 = vmul.f32 %v1800, %v580
    %v1803 = vadd.f32 %v1801, 1e-05
    %v1804 = vadd.f32 %v1802, 1e-05
    %v1805 = vrsqrt.pop %v1803
    %v1806 = vrsqrt.pop %v1804
    %v1808 = vlaneseq
    %v1809 = vshrl.u32 %v1808, 7
    %v1810 = vsub.s32 0, %v1809
    %v1811 = vrot.slane %v1769, %v1810
    %v1812 = vlaneseq
    %v1813 = vshrl.u32 %v1812, 7
    %v1814 = vsub.s32 1, %v1813
    %v1815 = vrot.slane %v1769, %v1814
    %v1818 = vmul.f32 %v1805, %v1811
    %v1819 = vmul.f32 %v1806, %v1815
    %v1820 = vlaneseq
    %v1821 = vshrl.u32 %v1820, 7
    %v1822 = vsub.s32 0, %v1821
    %v1823 = vrot.slane %v1818, %v1822
    %v1824 = vlaneseq
    %v1825 = vshrl.u32 %v1824, 7
    %v1826 = vsub.s32 0, %v1825
    %v1827 = vrot.slane %v1819, %v1826
    %v1828 = vmul.f32 %v1785, %v1823
    %v1829 = vmul.f32 %v1786, %v1827
    %v1831 = vlaneseq
    %v1832 = vshrl.u32 %v1831, 7
    %v1833 = vsub.s32 0, %v1832
    %v1834 = vrot.slane %v1770, %v1833
    %v1835 = vlaneseq
    %v1836 = vshrl.u32 %v1835, 7
    %v1837 = vsub.s32 1, %v1836
    %v1838 = vrot.slane %v1770, %v1837
    %v1841 = vadd.f32 %v1828, %v1834
    %v1842 = vadd.f32 %v1829, %v1838
    %v1843 = vld [vmem:[#allocation12 + $0x1e] sm:$0x1]
    %v1844 = vpack.c.bf16 %v1841, %v1841
    %v1845 = vpack.c.bf16 %v1842, %v1842
    %v1846 = vld [vmem:[#allocation7] sm:$0xf]
    %v1847 = vld [vmem:[#allocation7 + $0x4] sm:$0xf]
    %v1848 = vld [vmem:[#allocation7 + $0x8] sm:$0xf]
    %v1849 = vld [vmem:[#allocation7 + $0xc] sm:$0xf]
    %v1850 = vld [vmem:[#allocation7 + $0x10] sm:$0xf]
    %v1851 = vld [vmem:[#allocation7 + $0x14] sm:$0xf]
    %v1852 = vld [vmem:[#allocation7 + $0x18] sm:$0xf]
    %v1853 = vld [vmem:[#allocation7 + $0x1c] sm:$0xf]
    %v1854 = vld [vmem:[#allocation7 + $0x20] sm:$0xf]
    %v1855 = vld [vmem:[#allocation7 + $0x24] sm:$0xf]
    %v1856 = vld [vmem:[#allocation7 + $0x28] sm:$0xf]
    %v1857 = vld [vmem:[#allocation7 + $0x2c] sm:$0xf]
    %v1858 = vld [vmem:[#allocation7 + $0x30] sm:$0xf]
    %v1859 = vld [vmem:[#allocation7 + $0x34] sm:$0xf]
    %v1860 = vld [vmem:[#allocation7 + $0x38] sm:$0xf]
    %v1861 = vld [vmem:[#allocation7 + $0x3c] sm:$0xf]
    %v1862 = vld [vmem:[#allocation7 + $0x40] sm:$0xf]
    %v1863 = vld [vmem:[#allocation7 + $0x44] sm:$0xf]
    %v1864 = vld [vmem:[#allocation7 + $0x48] sm:$0xf]
    %v1865 = vld [vmem:[#allocation7 + $0x4c] sm:$0xf]
    %v1866 = vld [vmem:[#allocation7 + $0x50] sm:$0xf]
    %v1867 = vld [vmem:[#allocation7 + $0x54] sm:$0xf]
    %v1868 = vld [vmem:[#allocation7 + $0x58] sm:$0xf]
    %v1869 = vld [vmem:[#allocation7 + $0x5c] sm:$0xf]
    %v1870 = vld [vmem:[#allocation7 + $0x60] sm:$0xf]
    %v1871 = vld [vmem:[#allocation7 + $0x64] sm:$0xf]
    %v1872 = vld [vmem:[#allocation7 + $0x68] sm:$0xf]
    %v1873 = vld [vmem:[#allocation7 + $0x6c] sm:$0xf]
    %v1874 = vld [vmem:[#allocation7 + $0x70] sm:$0xf]
    %v1875 = vld [vmem:[#allocation7 + $0x74] sm:$0xf]
    %v1876 = vld [vmem:[#allocation7 + $0x78] sm:$0xf]
    %v1877 = vld [vmem:[#allocation7 + $0x7c] sm:$0xf]
    %v1879 = vlaneseq
    %v1880 = vshrl.u32 %v1879, 7
    %v1881 = vsub.s32 0, %v1880
    %v1882 = vrot.slane %v1843, %v1881
    %v1916 = vunpack.c.l.b16 %v1846
    %v1917 = vunpack.c.l.b16 %v1847
    %v1918 = vunpack.c.l.b16 %v1848
    %v1919 = vunpack.c.l.b16 %v1849
    %v1920 = vunpack.c.l.b16 %v1850
    %v1921 = vunpack.c.l.b16 %v1851
    %v1922 = vunpack.c.l.b16 %v1852
    %v1923 = vunpack.c.l.b16 %v1853
    %v1924 = vunpack.c.l.b16 %v1854
    %v1925 = vunpack.c.l.b16 %v1855
    %v1926 = vunpack.c.l.b16 %v1856
    %v1927 = vunpack.c.l.b16 %v1857
    %v1928 = vunpack.c.l.b16 %v1858
    %v1929 = vunpack.c.l.b16 %v1859
    %v1930 = vunpack.c.l.b16 %v1860
    %v1931 = vunpack.c.l.b16 %v1861
    %v1932 = vunpack.c.l.b16 %v1862
    %v1933 = vunpack.c.l.b16 %v1863
    %v1934 = vunpack.c.l.b16 %v1864
    %v1935 = vunpack.c.l.b16 %v1865
    %v1936 = vunpack.c.l.b16 %v1866
    %v1937 = vunpack.c.l.b16 %v1867
    %v1938 = vunpack.c.l.b16 %v1868
    %v1939 = vunpack.c.l.b16 %v1869
    %v1940 = vunpack.c.l.b16 %v1870
    %v1941 = vunpack.c.l.b16 %v1871
    %v1942 = vunpack.c.l.b16 %v1872
    %v1943 = vunpack.c.l.b16 %v1873
    %v1944 = vunpack.c.l.b16 %v1874
    %v1945 = vunpack.c.l.b16 %v1875
    %v1946 = vunpack.c.l.b16 %v1876
    %v1947 = vunpack.c.l.b16 %v1877
    %v1948 = vpack.c.b16 %v1917, %v1916
    %v1949 = vpack.c.b16 %v1919, %v1918
    %v1950 = vpack.c.b16 %v1921, %v1920
    %v1951 = vpack.c.b16 %v1923, %v1922
    %v1952 = vpack.c.b16 %v1925, %v1924
    %v1953 = vpack.c.b16 %v1927, %v1926
    %v1954 = vpack.c.b16 %v1929, %v1928
    %v1955 = vpack.c.b16 %v1931, %v1930
    %v1956 = vpack.c.b16 %v1933, %v1932
    %v1957 = vpack.c.b16 %v1935, %v1934
    %v1958 = vpack.c.b16 %v1937, %v1936
    %v1959 = vpack.c.b16 %v1939, %v1938
    %v1960 = vpack.c.b16 %v1941, %v1940
    %v1961 = vpack.c.b16 %v1943, %v1942
    %v1962 = vpack.c.b16 %v1945, %v1944
    %v1963 = vpack.c.b16 %v1947, %v1946
    %1980 = vmatprep.subr.bf16.mxu0 0
    %1981 = vmatpush1.bf16.msra.mxu0 %v1955
    %1982 = vmatprep.subr.bf16.mxu0 0
    %1983 = vmatpush1.bf16.msra.mxu0 %v1954
    %1984 = vmatprep.subr.bf16.mxu0 0
    %1985 = vmatpush1.bf16.msra.mxu0 %v1953
    %1986 = vmatprep.subr.bf16.mxu0 0
    %1987 = vmatpush1.bf16.msra.mxu0 %v1952
    %1988 = vmatprep.subr.bf16.mxu0 0
    %1989 = vmatpush1.bf16.msra.mxu0 %v1951
    %1990 = vmatprep.subr.bf16.mxu0 0
    %1991 = vmatpush1.bf16.msra.mxu0 %v1950
    %1992 = vmatprep.subr.bf16.mxu0 0
    %1993 = vmatpush1.bf16.msra.mxu0 %v1949
    %1994 = vmatprep.subr.bf16.mxu0 0
    %1995 = vmatpush1.bf16.msra.mxu0 %v1948
    %1996 = vmatprep.subr.bf16.mxu0 0
    %1997 = vmatpush2.bf16.msra.mxu0 %v1963
    %1998 = vmatprep.subr.bf16.mxu0 0
    %1999 = vmatpush2.bf16.msra.mxu0 %v1962
    %2000 = vmatprep.subr.bf16.mxu0 0
    %2001 = vmatpush2.bf16.msra.mxu0 %v1961
    %2002 = vmatprep.subr.bf16.mxu0 0
    %2003 = vmatpush2.bf16.msra.mxu0 %v1960
    %2004 = vmatprep.subr.bf16.mxu0 0
    %2005 = vmatpush2.bf16.msra.mxu0 %v1959
    %2006 = vmatprep.subr.bf16.mxu0 0
    %2007 = vmatpush2.bf16.msra.mxu0 %v1958
    %2008 = vmatprep.subr.bf16.mxu0 0
    %2009 = vmatpush2.bf16.msra.mxu0 %v1957
    %2010 = vmatprep.subr.bf16.mxu0 0
    %2011 = vmatpush2.bf16.msra.mxu0 %v1956
    %2012 = vmatprep.mubr.bf16.mxu0 %v1845
    %2013 = vmatmul.mubr.bf16.gmra.mxu0 %v1844
    %v2014 = vpop.f32.mrf.mxu0
    %v2015 = vadd.f32 %v1882, %v2014
    %v2016 = vpop.f32.mrf.mxu0
    %v2017 = vpop.f32.mrf.mxu0
    %v2018 = vpop.f32.mrf.mxu0
    %2019 = vdwg.mxu0
    %v2020 = vmax.f32 %v2015, 0.0
    %v2021 = vld [vmem:[#allocation12 + $0x1f] sm:$0x1f]
    %v2022 = vpack.c.bf16 %v2020, %v2020
    %v2023 = vld [vmem:[#allocation9] sm:$0xff]
    %v2024 = vld [vmem:[#allocation9 + $0x8] sm:$0xff]
    %v2025 = vld [vmem:[#allocation9 + $0x10] sm:$0xf]
    %v2026 = vld [vmem:[#allocation9 + $0x14] sm:$0xff]
    %v2027 = vld [vmem:[#allocation9 + $0x1c] sm:$0xff]
    %v2028 = vld [vmem:[#allocation9 + $0x24] sm:$0xf]
    %v2029 = vld [vmem:[#allocation9 + $0x28] sm:$0xff]
    %v2030 = vld [vmem:[#allocation9 + $0x30] sm:$0xff]
    %v2031 = vld [vmem:[#allocation9 + $0x38] sm:$0xf]
    %v2032 = vld [vmem:[#allocation9 + $0x3c] sm:$0xff]
    %v2033 = vld [vmem:[#allocation9 + $0x44] sm:$0xff]
    %v2034 = vld [vmem:[#allocation9 + $0x4c] sm:$0xf]
    %v2035 = vld [vmem:[#allocation9 + $0x50] sm:$0xff]
    %v2036 = vld [vmem:[#allocation9 + $0x58] sm:$0xff]
    %v2037 = vld [vmem:[#allocation9 + $0x60] sm:$0xf]
    %v2038 = vld [vmem:[#allocation9 + $0x64] sm:$0xff]
    %v2039 = vld [vmem:[#allocation9 + $0x6c] sm:$0xff]
    %v2040 = vld [vmem:[#allocation9 + $0x74] sm:$0xf]
    %v2041 = vld [vmem:[#allocation9 + $0x78] sm:$0xff]
    %v2042 = vld [vmem:[#allocation9 + $0x80] sm:$0xff]
    %v2043 = vld [vmem:[#allocation9 + $0x88] sm:$0xf]
    %v2044 = vld [vmem:[#allocation9 + $0x8c] sm:$0xff]
    %v2045 = vld [vmem:[#allocation9 + $0x94] sm:$0xff]
    %v2046 = vld [vmem:[#allocation9 + $0x9c] sm:$0xf]
    %v2047 = vld [vmem:[#allocation9 + $0xa0] sm:$0xff]
    %v2048 = vld [vmem:[#allocation9 + $0xa8] sm:$0xff]
    %v2049 = vld [vmem:[#allocation9 + $0xb0] sm:$0xf]
    %v2050 = vld [vmem:[#allocation9 + $0xb4] sm:$0xff]
    %v2051 = vld [vmem:[#allocation9 + $0xbc] sm:$0xff]
    %v2052 = vld [vmem:[#allocation9 + $0xc4] sm:$0xf]
    %v2053 = vld [vmem:[#allocation9 + $0xc8] sm:$0xff]
    %v2054 = vld [vmem:[#allocation9 + $0xd0] sm:$0xff]
    %v2055 = vld [vmem:[#allocation9 + $0xd8] sm:$0xf]
    %v2056 = vld [vmem:[#allocation9 + $0xdc] sm:$0xff]
    %v2057 = vld [vmem:[#allocation9 + $0xe4] sm:$0xff]
    %v2058 = vld [vmem:[#allocation9 + $0xec] sm:$0xf]
    %v2059 = vld [vmem:[#allocation9 + $0xf0] sm:$0xff]
    %v2060 = vld [vmem:[#allocation9 + $0xf8] sm:$0xff]
    %v2061 = vld [vmem:[#allocation9 + $0x100] sm:$0xf]
    %v2062 = vld [vmem:[#allocation9 + $0x104] sm:$0xff]
    %v2063 = vld [vmem:[#allocation9 + $0x10c] sm:$0xff]
    %v2064 = vld [vmem:[#allocation9 + $0x114] sm:$0xf]
    %v2065 = vld [vmem:[#allocation9 + $0x118] sm:$0xff]
    %v2066 = vld [vmem:[#allocation9 + $0x120] sm:$0xff]
    %v2067 = vld [vmem:[#allocation9 + $0x128] sm:$0xf]
    %v2068 = vld [vmem:[#allocation9 + $0x12c] sm:$0xff]
    %v2069 = vld [vmem:[#allocation9 + $0x134] sm:$0xff]
    %v2070 = vld [vmem:[#allocation9 + $0x13c] sm:$0xf]
    %v2072 = vlaneseq
    %v2073 = vshrl.u32 %v2072, 7
    %v2074 = vsub.s32 0, %v2073
    %v2075 = vrot.slane %v2021, %v2074
    %v2076 = vlaneseq
    %v2077 = vshrl.u32 %v2076, 7
    %v2078 = vsub.s32 1, %v2077
    %v2079 = vrot.slane %v2021, %v2078
    %v2080 = vlaneseq
    %v2081 = vshrl.u32 %v2080, 7
    %v2082 = vsub.s32 2, %v2081
    %v2083 = vrot.slane %v2021, %v2082
    %v2084 = vlaneseq
    %v2085 = vshrl.u32 %v2084, 7
    %v2086 = vsub.s32 3, %v2085
    %v2087 = vrot.slane %v2021, %v2086
    %v2088 = vlaneseq
    %v2089 = vshrl.u32 %v2088, 7
    %v2090 = vsub.s32 4, %v2089
    %v2091 = vrot.slane %v2021, %v2090
    %v2145 = vunpack.c.l.b16 %v2023
    %v2146 = vunpack.c.h.b16 %v2023
    %v2147 = vunpack.c.l.b16 %v2024
    %v2148 = vunpack.c.h.b16 %v2024
    %v2149 = vunpack.c.l.b16 %v2025
    %v2150 = vunpack.c.l.b16 %v2026
    %v2151 = vunpack.c.h.b16 %v2026
    %v2152 = vunpack.c.l.b16 %v2027
    %v2153 = vunpack.c.h.b16 %v2027
    %v2154 = vunpack.c.l.b16 %v2028
    %v2155 = vunpack.c.l.b16 %v2029
    %v2156 = vunpack.c.h.b16 %v2029
    %v2157 = vunpack.c.l.b16 %v2030
    %v2158 = vunpack.c.h.b16 %v2030
    %v2159 = vunpack.c.l.b16 %v2031
    %v2160 = vunpack.c.l.b16 %v2032
    %v2161 = vunpack.c.h.b16 %v2032
    %v2162 = vunpack.c.l.b16 %v2033
    %v2163 = vunpack.c.h.b16 %v2033
    %v2164 = vunpack.c.l.b16 %v2034
    %v2165 = vunpack.c.l.b16 %v2035
    %v2166 = vunpack.c.h.b16 %v2035
    %v2167 = vunpack.c.l.b16 %v2036
    %v2168 = vunpack.c.h.b16 %v2036
    %v2169 = vunpack.c.l.b16 %v2037
    %v2170 = vunpack.c.l.b16 %v2038
    %v2171 = vunpack.c.h.b16 %v2038
    %v2172 = vunpack.c.l.b16 %v2039
    %v2173 = vunpack.c.h.b16 %v2039
    %v2174 = vunpack.c.l.b16 %v2040
    %v2175 = vunpack.c.l.b16 %v2041
    %v2176 = vunpack.c.h.b16 %v2041
    %v2177 = vunpack.c.l.b16 %v2042
    %v2178 = vunpack.c.h.b16 %v2042
    %v2179 = vunpack.c.l.b16 %v2043
    %v2180 = vunpack.c.l.b16 %v2044
    %v2181 = vunpack.c.h.b16 %v2044
    %v2182 = vunpack.c.l.b16 %v2045
    %v2183 = vunpack.c.h.b16 %v2045
    %v2184 = vunpack.c.l.b16 %v2046
    %v2185 = vunpack.c.l.b16 %v2047
    %v2186 = vunpack.c.h.b16 %v2047
    %v2187 = vunpack.c.l.b16 %v2048
    %v2188 = vunpack.c.h.b16 %v2048
    %v2189 = vunpack.c.l.b16 %v2049
    %v2190 = vunpack.c.l.b16 %v2050
    %v2191 = vunpack.c.h.b16 %v2050
    %v2192 = vunpack.c.l.b16 %v2051
    %v2193 = vunpack.c.h.b16 %v2051
    %v2194 = vunpack.c.l.b16 %v2052
    %v2195 = vunpack.c.l.b16 %v2053
    %v2196 = vunpack.c.h.b16 %v2053
    %v2197 = vunpack.c.l.b16 %v2054
    %v2198 = vunpack.c.h.b16 %v2054
    %v2199 = vunpack.c.l.b16 %v2055
    %v2200 = vunpack.c.l.b16 %v2056
    %v2201 = vunpack.c.h.b16 %v2056
    %v2202 = vunpack.c.l.b16 %v2057
    %v2203 = vunpack.c.h.b16 %v2057
    %v2204 = vunpack.c.l.b16 %v2058
    %v2205 = vunpack.c.l.b16 %v2059
    %v2206 = vunpack.c.h.b16 %v2059
    %v2207 = vunpack.c.l.b16 %v2060
    %v2208 = vunpack.c.h.b16 %v2060
    %v2209 = vunpack.c.l.b16 %v2061
    %v2210 = vunpack.c.l.b16 %v2062
    %v2211 = vunpack.c.h.b16 %v2062
    %v2212 = vunpack.c.l.b16 %v2063
    %v2213 = vunpack.c.h.b16 %v2063
    %v2214 = vunpack.c.l.b16 %v2064
    %v2215 = vunpack.c.l.b16 %v2065
    %v2216 = vunpack.c.h.b16 %v2065
    %v2217 = vunpack.c.l.b16 %v2066
    %v2218 = vunpack.c.h.b16 %v2066
    %v2219 = vunpack.c.l.b16 %v2067
    %v2220 = vunpack.c.l.b16 %v2068
    %v2221 = vunpack.c.h.b16 %v2068
    %v2222 = vunpack.c.l.b16 %v2069
    %v2223 = vunpack.c.h.b16 %v2069
    %v2224 = vunpack.c.l.b16 %v2070
    %v2225 = vpack.c.b16 %v2150, %v2145
    %v2226 = vpack.c.b16 %v2151, %v2146
    %v2227 = vpack.c.b16 %v2152, %v2147
    %v2228 = vpack.c.b16 %v2153, %v2148
    %v2229 = vpack.c.b16 %v2154, %v2149
    %v2230 = vpack.c.b16 %v2160, %v2155
    %v2231 = vpack.c.b16 %v2161, %v2156
    %v2232 = vpack.c.b16 %v2162, %v2157
    %v2233 = vpack.c.b16 %v2163, %v2158
    %v2234 = vpack.c.b16 %v2164, %v2159
    %v2235 = vpack.c.b16 %v2170, %v2165
    %v2236 = vpack.c.b16 %v2171, %v2166
    %v2237 = vpack.c.b16 %v2172, %v2167
    %v2238 = vpack.c.b16 %v2173, %v2168
    %v2239 = vpack.c.b16 %v2174, %v2169
    %v2240 = vpack.c.b16 %v2180, %v2175
    %v2241 = vpack.c.b16 %v2181, %v2176
    %v2242 = vpack.c.b16 %v2182, %v2177
    %v2243 = vpack.c.b16 %v2183, %v2178
    %v2244 = vpack.c.b16 %v2184, %v2179
    %v2245 = vpack.c.b16 %v2190, %v2185
    %v2246 = vpack.c.b16 %v2191, %v2186
    %v2247 = vpack.c.b16 %v2192, %v2187
    %v2248 = vpack.c.b16 %v2193, %v2188
    %v2249 = vpack.c.b16 %v2194, %v2189
    %v2250 = vpack.c.b16 %v2200, %v2195
    %v2251 = vpack.c.b16 %v2201, %v2196
    %v2252 = vpack.c.b16 %v2202, %v2197
    %v2253 = vpack.c.b16 %v2203, %v2198
    %v2254 = vpack.c.b16 %v2204, %v2199
    %v2255 = vpack.c.b16 %v2210, %v2205
    %v2256 = vpack.c.b16 %v2211, %v2206
    %v2257 = vpack.c.b16 %v2212, %v2207
    %v2258 = vpack.c.b16 %v2213, %v2208
    %v2259 = vpack.c.b16 %v2214, %v2209
    %v2260 = vpack.c.b16 %v2220, %v2215
    %v2261 = vpack.c.b16 %v2221, %v2216
    %v2262 = vpack.c.b16 %v2222, %v2217
    %v2263 = vpack.c.b16 %v2223, %v2218
    %v2264 = vpack.c.b16 %v2224, %v2219
    %2305 = vmatprep.subr.bf16.mxu0 %v2261
    %2306 = vmatpush1.bf16.msra.mxu0 %v2260
    %2307 = vmatprep.subr.bf16.mxu0 %v2256
    %2308 = vmatpush1.bf16.msra.mxu0 %v2255
    %2309 = vmatprep.subr.bf16.mxu0 %v2251
    %2310 = vmatpush1.bf16.msra.mxu0 %v2250
    %2311 = vmatprep.subr.bf16.mxu0 %v2246
    %2312 = vmatpush1.bf16.msra.mxu0 %v2245
    %2313 = vmatprep.subr.bf16.mxu0 %v2241
    %2314 = vmatpush1.bf16.msra.mxu0 %v2240
    %2315 = vmatprep.subr.bf16.mxu0 %v2236
    %2316 = vmatpush1.bf16.msra.mxu0 %v2235
    %2317 = vmatprep.subr.bf16.mxu0 %v2231
    %2318 = vmatpush1.bf16.msra.mxu0 %v2230
    %2319 = vmatprep.subr.bf16.mxu0 %v2226
    %2320 = vmatpush1.bf16.msra.mxu0 %v2225
    %2321 = vmatprep.subr.bf16.mxu0 0
    %2322 = vmatpush2.bf16.msra.mxu0 0
    %2323 = vmatprep.subr.bf16.mxu0 0
    %2324 = vmatpush2.bf16.msra.mxu0 0
    %2325 = vmatprep.subr.bf16.mxu0 0
    %2326 = vmatpush2.bf16.msra.mxu0 0
    %2327 = vmatprep.subr.bf16.mxu0 0
    %2328 = vmatpush2.bf16.msra.mxu0 0
    %2329 = vmatprep.subr.bf16.mxu0 0
    %2330 = vmatpush2.bf16.msra.mxu0 0
    %2331 = vmatprep.subr.bf16.mxu0 0
    %2332 = vmatpush2.bf16.msra.mxu0 0
    %2333 = vmatprep.subr.bf16.mxu0 0
    %2334 = vmatpush2.bf16.msra.mxu0 0
    %2335 = vmatprep.subr.bf16.mxu0 0
    %2336 = vmatpush2.bf16.msra.mxu0 0
    %2337 = vmatprep.mubr.bf16.mxu0 0
    %2338 = vmatmul.mubr.bf16.gmra.mxu0 %v2022
    %v2339 = vpop.f32.mrf.mxu0
    %v2340 = vadd.f32 %v2075, %v2339
    %v2341 = vpop.f32.mrf.mxu0
    %v2342 = vadd.f32 %v2079, %v2341
    %v2343 = vpop.f32.mrf.mxu0
    %v2344 = vpop.f32.mrf.mxu0
    %2345 = vdwg.mxu0
    %2346 = vmatprep.subr.bf16.mxu0 %v2263
    %2347 = vmatpush1.bf16.msra.mxu0 %v2262
    %2348 = vmatprep.subr.bf16.mxu0 %v2258
    %2349 = vmatpush1.bf16.msra.mxu0 %v2257
    %2350 = vmatprep.subr.bf16.mxu0 %v2253
    %2351 = vmatpush1.bf16.msra.mxu0 %v2252
    %2352 = vmatprep.subr.bf16.mxu0 %v2248
    %2353 = vmatpush1.bf16.msra.mxu0 %v2247
    %2354 = vmatprep.subr.bf16.mxu0 %v2243
    %2355 = vmatpush1.bf16.msra.mxu0 %v2242
    %2356 = vmatprep.subr.bf16.mxu0 %v2238
    %2357 = vmatpush1.bf16.msra.mxu0 %v2237
    %2358 = vmatprep.subr.bf16.mxu0 %v2233
    %2359 = vmatpush1.bf16.msra.mxu0 %v2232
    %2360 = vmatprep.subr.bf16.mxu0 %v2228
    %2361 = vmatpush1.bf16.msra.mxu0 %v2227
    %2362 = vmatprep.subr.bf16.mxu0 0
    %2363 = vmatpush2.bf16.msra.mxu0 0
    %2364 = vmatprep.subr.bf16.mxu0 0
    %2365 = vmatpush2.bf16.msra.mxu0 0
    %2366 = vmatprep.subr.bf16.mxu0 0
    %2367 = vmatpush2.bf16.msra.mxu0 0
    %2368 = vmatprep.subr.bf16.mxu0 0
    %2369 = vmatpush2.bf16.msra.mxu0 0
    %2370 = vmatprep.subr.bf16.mxu0 0
    %2371 = vmatpush2.bf16.msra.mxu0 0
    %2372 = vmatprep.subr.bf16.mxu0 0
    %2373 = vmatpush2.bf16.msra.mxu0 0
    %2374 = vmatprep.subr.bf16.mxu0 0
    %2375 = vmatpush2.bf16.msra.mxu0 0
    %2376 = vmatprep.subr.bf16.mxu0 0
    %2377 = vmatpush2.bf16.msra.mxu0 0
    %2378 = vmatprep.mubr.bf16.mxu0 0
    %2379 = vmatmul.mubr.bf16.gmra.mxu0 %v2022
    %v2380 = vpop.f32.mrf.mxu0
    %v2381 = vadd.f32 %v2083, %v2380
    %v2382 = vpop.f32.mrf.mxu0
    %v2383 = vadd.f32 %v2087, %v2382
    %v2384 = vpop.f32.mrf.mxu0
    %v2385 = vpop.f32.mrf.mxu0
    %2386 = vdwg.mxu0
    %2387 = vmatprep.subr.bf16.mxu0 0
    %2388 = vmatpush1.bf16.msra.mxu0 %v2264
    %2389 = vmatprep.subr.bf16.mxu0 0
    %2390 = vmatpush1.bf16.msra.mxu0 %v2259
    %2391 = vmatprep.subr.bf16.mxu0 0
    %2392 = vmatpush1.bf16.msra.mxu0 %v2254
    %2393 = vmatprep.subr.bf16.mxu0 0
    %2394 = vmatpush1.bf16.msra.mxu0 %v2249
    %2395 = vmatprep.subr.bf16.mxu0 0
    %2396 = vmatpush1.bf16.msra.mxu0 %v2244
    %2397 = vmatprep.subr.bf16.mxu0 0
    %2398 = vmatpush1.bf16.msra.mxu0 %v2239
    %2399 = vmatprep.subr.bf16.mxu0 0
    %2400 = vmatpush1.bf16.msra.mxu0 %v2234
    %2401 = vmatprep.subr.bf16.mxu0 0
    %2402 = vmatpush1.bf16.msra.mxu0 %v2229
    %2403 = vmatprep.subr.bf16.mxu0 0
    %2404 = vmatpush2.bf16.msra.mxu0 0
    %2405 = vmatprep.subr.bf16.mxu0 0
    %2406 = vmatpush2.bf16.msra.mxu0 0
    %2407 = vmatprep.subr.bf16.mxu0 0
    %2408 = vmatpush2.bf16.msra.mxu0 0
    %2409 = vmatprep.subr.bf16.mxu0 0
    %2410 = vmatpush2.bf16.msra.mxu0 0
    %2411 = vmatprep.subr.bf16.mxu0 0
    %2412 = vmatpush2.bf16.msra.mxu0 0
    %2413 = vmatprep.subr.bf16.mxu0 0
    %2414 = vmatpush2.bf16.msra.mxu0 0
    %2415 = vmatprep.subr.bf16.mxu0 0
    %2416 = vmatpush2.bf16.msra.mxu0 0
    %2417 = vmatprep.subr.bf16.mxu0 0
    %2418 = vmatpush2.bf16.msra.mxu0 0
    %2419 = vmatprep.mubr.bf16.mxu0 0
    %2420 = vmatmul.mubr.bf16.gmra.mxu0 %v2022
    %v2421 = vpop.f32.mrf.mxu0
    %v2422 = vadd.f32 %v2091, %v2421
    %v2423 = vpop.f32.mrf.mxu0
    %v2424 = vpop.f32.mrf.mxu0
    %v2425 = vpop.f32.mrf.mxu0
    %2426 = vdwg.mxu0
    %v2427 = vmax.f32 %v2340, 0.0
    %v2428 = vmax.f32 %v2342, 0.0
    %v2429 = vmax.f32 %v2381, 0.0
    %v2430 = vmax.f32 %v2383, 0.0
    %v2431 = vsub.f32 0.0, %v2422
    %v2432 = vmul.f32 %v2431, 1.442695
    %v2433 = vpow.pop %v2432
    %v2434 = vadd.f32 %v2433, 1.0
    %v2435 = vrcp.pop %v2434
    %v2436 = vmul.f32 1.0, %v2435
    %v2437 = vld [vmem:[#allocation12 + $0x24] sm:$0x1]
    %v2438 = vpack.c.bf16 %v2427, %v2427
    %v2439 = vpack.c.bf16 %v2428, %v2428
    %v2440 = vpack.c.bf16 %v2429, %v2429
    %v2441 = vpack.c.bf16 %v2430, %v2430
    %v2442 = vld [vmem:[#allocation10] sm:$0xf]
    %v2443 = vld [vmem:[#allocation10 + $0x4] sm:$0xf]
    %v2444 = vld [vmem:[#allocation10 + $0x8] sm:$0xf]
    %v2445 = vld [vmem:[#allocation10 + $0xc] sm:$0xf]
    %v2446 = vld [vmem:[#allocation10 + $0x10] sm:$0xf]
    %v2447 = vld [vmem:[#allocation10 + $0x14] sm:$0xf]
    %v2448 = vld [vmem:[#allocation10 + $0x18] sm:$0xf]
    %v2449 = vld [vmem:[#allocation10 + $0x1c] sm:$0xf]
    %v2450 = vld [vmem:[#allocation10 + $0x20] sm:$0xf]
    %v2451 = vld [vmem:[#allocation10 + $0x24] sm:$0xf]
    %v2452 = vld [vmem:[#allocation10 + $0x28] sm:$0xf]
    %v2453 = vld [vmem:[#allocation10 + $0x2c] sm:$0xf]
    %v2454 = vld [vmem:[#allocation10 + $0x30] sm:$0xf]
    %v2455 = vld [vmem:[#allocation10 + $0x34] sm:$0xf]
    %v2456 = vld [vmem:[#allocation10 + $0x38] sm:$0xf]
    %v2457 = vld [vmem:[#allocation10 + $0x3c] sm:$0xf]
    %v2458 = vld [vmem:[#allocation10 + $0x40] sm:$0xf]
    %v2459 = vld [vmem:[#allocation10 + $0x44] sm:$0xf]
    %v2460 = vld [vmem:[#allocation10 + $0x48] sm:$0xf]
    %v2461 = vld [vmem:[#allocation10 + $0x4c] sm:$0xf]
    %v2462 = vld [vmem:[#allocation10 + $0x50] sm:$0xf]
    %v2463 = vld [vmem:[#allocation10 + $0x54] sm:$0xf]
    %v2464 = vld [vmem:[#allocation10 + $0x58] sm:$0xf]
    %v2465 = vld [vmem:[#allocation10 + $0x5c] sm:$0xf]
    %v2466 = vld [vmem:[#allocation10 + $0x60] sm:$0xf]
    %v2467 = vld [vmem:[#allocation10 + $0x64] sm:$0xf]
    %v2468 = vld [vmem:[#allocation10 + $0x68] sm:$0xf]
    %v2469 = vld [vmem:[#allocation10 + $0x6c] sm:$0xf]
    %v2470 = vld [vmem:[#allocation10 + $0x70] sm:$0xf]
    %v2471 = vld [vmem:[#allocation10 + $0x74] sm:$0xf]
    %v2472 = vld [vmem:[#allocation10 + $0x78] sm:$0xf]
    %v2473 = vld [vmem:[#allocation10 + $0x7c] sm:$0xf]
    %v2474 = vld [vmem:[#allocation10 + $0x80] sm:$0xf]
    %v2475 = vld [vmem:[#allocation10 + $0x84] sm:$0xf]
    %v2476 = vld [vmem:[#allocation10 + $0x88] sm:$0xf]
    %v2477 = vld [vmem:[#allocation10 + $0x8c] sm:$0xf]
    %v2478 = vld [vmem:[#allocation10 + $0x90] sm:$0xf]
    %v2479 = vld [vmem:[#allocation10 + $0x94] sm:$0xf]
    %v2480 = vld [vmem:[#allocation10 + $0x98] sm:$0xf]
    %v2481 = vld [vmem:[#allocation10 + $0x9c] sm:$0xf]
    %v2482 = vld [vmem:[#allocation10 + $0xa0] sm:$0xf]
    %v2483 = vld [vmem:[#allocation10 + $0xa4] sm:$0xf]
    %v2484 = vld [vmem:[#allocation10 + $0xa8] sm:$0xf]
    %v2485 = vld [vmem:[#allocation10 + $0xac] sm:$0xf]
    %v2486 = vld [vmem:[#allocation10 + $0xb0] sm:$0xf]
    %v2487 = vld [vmem:[#allocation10 + $0xb4] sm:$0xf]
    %v2488 = vld [vmem:[#allocation10 + $0xb8] sm:$0xf]
    %v2489 = vld [vmem:[#allocation10 + $0xbc] sm:$0xf]
    %v2490 = vld [vmem:[#allocation10 + $0xc0] sm:$0xf]
    %v2491 = vld [vmem:[#allocation10 + $0xc4] sm:$0xf]
    %v2492 = vld [vmem:[#allocation10 + $0xc8] sm:$0xf]
    %v2493 = vld [vmem:[#allocation10 + $0xcc] sm:$0xf]
    %v2494 = vld [vmem:[#allocation10 + $0xd0] sm:$0xf]
    %v2495 = vld [vmem:[#allocation10 + $0xd4] sm:$0xf]
    %v2496 = vld [vmem:[#allocation10 + $0xd8] sm:$0xf]
    %v2497 = vld [vmem:[#allocation10 + $0xdc] sm:$0xf]
    %v2498 = vld [vmem:[#allocation10 + $0xe0] sm:$0xf]
    %v2499 = vld [vmem:[#allocation10 + $0xe4] sm:$0xf]
    %v2500 = vld [vmem:[#allocation10 + $0xe8] sm:$0xf]
    %v2501 = vld [vmem:[#allocation10 + $0xec] sm:$0xf]
    %v2502 = vld [vmem:[#allocation10 + $0xf0] sm:$0xf]
    %v2503 = vld [vmem:[#allocation10 + $0xf4] sm:$0xf]
    %v2504 = vld [vmem:[#allocation10 + $0xf8] sm:$0xf]
    %v2505 = vld [vmem:[#allocation10 + $0xfc] sm:$0xf]
    %v2507 = vlaneseq
    %v2508 = vshrl.u32 %v2507, 7
    %v2509 = vsub.s32 0, %v2508
    %v2510 = vrot.slane %v2437, %v2509
    %v2576 = vunpack.c.l.b16 %v2442
    %v2577 = vunpack.c.l.b16 %v2443
    %v2578 = vunpack.c.l.b16 %v2444
    %v2579 = vunpack.c.l.b16 %v2445
    %v2580 = vunpack.c.l.b16 %v2446
    %v2581 = vunpack.c.l.b16 %v2447
    %v2582 = vunpack.c.l.b16 %v2448
    %v2583 = vunpack.c.l.b16 %v2449
    %v2584 = vunpack.c.l.b16 %v2450
    %v2585 = vunpack.c.l.b16 %v2451
    %v2586 = vunpack.c.l.b16 %v2452
    %v2587 = vunpack.c.l.b16 %v2453
    %v2588 = vunpack.c.l.b16 %v2454
    %v2589 = vunpack.c.l.b16 %v2455
    %v2590 = vunpack.c.l.b16 %v2456
    %v2591 = vunpack.c.l.b16 %v2457
    %v2592 = vunpack.c.l.b16 %v2458
    %v2593 = vunpack.c.l.b16 %v2459
    %v2594 = vunpack.c.l.b16 %v2460
    %v2595 = vunpack.c.l.b16 %v2461
    %v2596 = vunpack.c.l.b16 %v2462
    %v2597 = vunpack.c.l.b16 %v2463
    %v2598 = vunpack.c.l.b16 %v2464
    %v2599 = vunpack.c.l.b16 %v2465
    %v2600 = vunpack.c.l.b16 %v2466
    %v2601 = vunpack.c.l.b16 %v2467
    %v2602 = vunpack.c.l.b16 %v2468
    %v2603 = vunpack.c.l.b16 %v2469
    %v2604 = vunpack.c.l.b16 %v2470
    %v2605 = vunpack.c.l.b16 %v2471
    %v2606 = vunpack.c.l.b16 %v2472
    %v2607 = vunpack.c.l.b16 %v2473
    %v2608 = vunpack.c.l.b16 %v2474
    %v2609 = vunpack.c.l.b16 %v2475
    %v2610 = vunpack.c.l.b16 %v2476
    %v2611 = vunpack.c.l.b16 %v2477
    %v2612 = vunpack.c.l.b16 %v2478
    %v2613 = vunpack.c.l.b16 %v2479
    %v2614 = vunpack.c.l.b16 %v2480
    %v2615 = vunpack.c.l.b16 %v2481
    %v2616 = vunpack.c.l.b16 %v2482
    %v2617 = vunpack.c.l.b16 %v2483
    %v2618 = vunpack.c.l.b16 %v2484
    %v2619 = vunpack.c.l.b16 %v2485
    %v2620 = vunpack.c.l.b16 %v2486
    %v2621 = vunpack.c.l.b16 %v2487
    %v2622 = vunpack.c.l.b16 %v2488
    %v2623 = vunpack.c.l.b16 %v2489
    %v2624 = vunpack.c.l.b16 %v2490
    %v2625 = vunpack.c.l.b16 %v2491
    %v2626 = vunpack.c.l.b16 %v2492
    %v2627 = vunpack.c.l.b16 %v2493
    %v2628 = vunpack.c.l.b16 %v2494
    %v2629 = vunpack.c.l.b16 %v2495
    %v2630 = vunpack.c.l.b16 %v2496
    %v2631 = vunpack.c.l.b16 %v2497
    %v2632 = vunpack.c.l.b16 %v2498
    %v2633 = vunpack.c.l.b16 %v2499
    %v2634 = vunpack.c.l.b16 %v2500
    %v2635 = vunpack.c.l.b16 %v2501
    %v2636 = vunpack.c.l.b16 %v2502
    %v2637 = vunpack.c.l.b16 %v2503
    %v2638 = vunpack.c.l.b16 %v2504
    %v2639 = vunpack.c.l.b16 %v2505
    %v2640 = vpack.c.b16 %v2577, %v2576
    %v2641 = vpack.c.b16 %v2579, %v2578
    %v2642 = vpack.c.b16 %v2581, %v2580
    %v2643 = vpack.c.b16 %v2583, %v2582
    %v2644 = vpack.c.b16 %v2585, %v2584
    %v2645 = vpack.c.b16 %v2587, %v2586
    %v2646 = vpack.c.b16 %v2589, %v2588
    %v2647 = vpack.c.b16 %v2591, %v2590
    %v2648 = vpack.c.b16 %v2593, %v2592
    %v2649 = vpack.c.b16 %v2595, %v2594
    %v2650 = vpack.c.b16 %v2597, %v2596
    %v2651 = vpack.c.b16 %v2599, %v2598
    %v2652 = vpack.c.b16 %v2601, %v2600
    %v2653 = vpack.c.b16 %v2603, %v2602
    %v2654 = vpack.c.b16 %v2605, %v2604
    %v2655 = vpack.c.b16 %v2607, %v2606
    %v2656 = vpack.c.b16 %v2609, %v2608
    %v2657 = vpack.c.b16 %v2611, %v2610
    %v2658 = vpack.c.b16 %v2613, %v2612
    %v2659 = vpack.c.b16 %v2615, %v2614
    %v2660 = vpack.c.b16 %v2617, %v2616
    %v2661 = vpack.c.b16 %v2619, %v2618
    %v2662 = vpack.c.b16 %v2621, %v2620
    %v2663 = vpack.c.b16 %v2623, %v2622
    %v2664 = vpack.c.b16 %v2625, %v2624
    %v2665 = vpack.c.b16 %v2627, %v2626
    %v2666 = vpack.c.b16 %v2629, %v2628
    %v2667 = vpack.c.b16 %v2631, %v2630
    %v2668 = vpack.c.b16 %v2633, %v2632
    %v2669 = vpack.c.b16 %v2635, %v2634
    %v2670 = vpack.c.b16 %v2637, %v2636
    %v2671 = vpack.c.b16 %v2639, %v2638
    %2704 = vmatprep.subr.bf16.mxu0 0
    %2705 = vmatpush1.bf16.msra.mxu0 %v2647
    %2706 = vmatprep.subr.bf16.mxu0 0
    %2707 = vmatpush1.bf16.msra.mxu0 %v2646
    %2708 = vmatprep.subr.bf16.mxu0 0
    %2709 = vmatpush1.bf16.msra.mxu0 %v2645
    %2710 = vmatprep.subr.bf16.mxu0 0
    %2711 = vmatpush1.bf16.msra.mxu0 %v2644
    %2712 = vmatprep.subr.bf16.mxu0 0
    %2713 = vmatpush1.bf16.msra.mxu0 %v2643
    %2714 = vmatprep.subr.bf16.mxu0 0
    %2715 = vmatpush1.bf16.msra.mxu0 %v2642
    %2716 = vmatprep.subr.bf16.mxu0 0
    %2717 = vmatpush1.bf16.msra.mxu0 %v2641
    %2718 = vmatprep.subr.bf16.mxu0 0
    %2719 = vmatpush1.bf16.msra.mxu0 %v2640
    %2720 = vmatprep.subr.bf16.mxu0 0
    %2721 = vmatpush2.bf16.msra.mxu0 %v2655
    %2722 = vmatprep.subr.bf16.mxu0 0
    %2723 = vmatpush2.bf16.msra.mxu0 %v2654
    %2724 = vmatprep.subr.bf16.mxu0 0
    %2725 = vmatpush2.bf16.msra.mxu0 %v2653
    %2726 = vmatprep.subr.bf16.mxu0 0
    %2727 = vmatpush2.bf16.msra.mxu0 %v2652
    %2728 = vmatprep.subr.bf16.mxu0 0
    %2729 = vmatpush2.bf16.msra.mxu0 %v2651
    %2730 = vmatprep.subr.bf16.mxu0 0
    %2731 = vmatpush2.bf16.msra.mxu0 %v2650
    %2732 = vmatprep.subr.bf16.mxu0 0
    %2733 = vmatpush2.bf16.msra.mxu0 %v2649
    %2734 = vmatprep.subr.bf16.mxu0 0
    %2735 = vmatpush2.bf16.msra.mxu0 %v2648
    %2736 = vmatprep.mubr.bf16.mxu0 %v2439
    %2737 = vmatmul.mubr.bf16.gmra.mxu0 %v2438
    %v2738 = vpop.f32.mrf.mxu0
    %v2739 = vadd.f32 %v2510, %v2738
    %v2740 = vpop.f32.mrf.mxu0
    %v2741 = vpop.f32.mrf.mxu0
    %v2742 = vpop.f32.mrf.mxu0
    %2743 = vdwg.mxu0
    %2744 = vmatprep.subr.bf16.mxu0 0
    %2745 = vmatpush1.bf16.msra.mxu0 %v2663
    %2746 = vmatprep.subr.bf16.mxu0 0
    %2747 = vmatpush1.bf16.msra.mxu0 %v2662
    %2748 = vmatprep.subr.bf16.mxu0 0
    %2749 = vmatpush1.bf16.msra.mxu0 %v2661
    %2750 = vmatprep.subr.bf16.mxu0 0
    %2751 = vmatpush1.bf16.msra.mxu0 %v2660
    %2752 = vmatprep.subr.bf16.mxu0 0
    %2753 = vmatpush1.bf16.msra.mxu0 %v2659
    %2754 = vmatprep.subr.bf16.mxu0 0
    %2755 = vmatpush1.bf16.msra.mxu0 %v2658
    %2756 = vmatprep.subr.bf16.mxu0 0
    %2757 = vmatpush1.bf16.msra.mxu0 %v2657
    %2758 = vmatprep.subr.bf16.mxu0 0
    %2759 = vmatpush1.bf16.msra.mxu0 %v2656
    %2760 = vmatprep.subr.bf16.mxu0 0
    %2761 = vmatpush2.bf16.msra.mxu0 %v2671
    %2762 = vmatprep.subr.bf16.mxu0 0
    %2763 = vmatpush2.bf16.msra.mxu0 %v2670
    %2764 = vmatprep.subr.bf16.mxu0 0
    %2765 = vmatpush2.bf16.msra.mxu0 %v2669
    %2766 = vmatprep.subr.bf16.mxu0 0
    %2767 = vmatpush2.bf16.msra.mxu0 %v2668
    %2768 = vmatprep.subr.bf16.mxu0 0
    %2769 = vmatpush2.bf16.msra.mxu0 %v2667
    %2770 = vmatprep.subr.bf16.mxu0 0
    %2771 = vmatpush2.bf16.msra.mxu0 %v2666
    %2772 = vmatprep.subr.bf16.mxu0 0
    %2773 = vmatpush2.bf16.msra.mxu0 %v2665
    %2774 = vmatprep.subr.bf16.mxu0 0
    %2775 = vmatpush2.bf16.msra.mxu0 %v2664
    %2776 = vmatprep.mubr.bf16.mxu0 %v2441
    %2777 = vmatmul.mubr.bf16.gmra.mxu0 %v2440
    %v2778 = vpop.f32.mrf.mxu0
    %v2779 = vadd.f32 %v2739, %v2778
    %v2780 = vpop.f32.mrf.mxu0
    %v2781 = vpop.f32.mrf.mxu0
    %v2782 = vpop.f32.mrf.mxu0
    %2783 = vdwg.mxu0
    %2784 = vst [vmem:[%s7] sm:$0xff] %v2779
    %2785 = vst [vmem:[%s7 + $0x8] sm:$0xff] %v2020
    %2786 = vst [vmem:[%s7 + $0x10] sm:$0xff] %v2436
    // Predicated region
    $region58: #{sma_forward.1} parent=1 // pred_check
      _
    $region59: #{sma_forward.1} parent=1 // pred_check_branch
      %2788 = sbr.rel (0) target = $region61
    $region60: #{sma_forward.1} parent=1 // pred_region
      _
    $region61: #{sma_forward.1} parent=1 // pred_fallthru
      _
    // Predicated region
    $region62: #{sma_forward.1} parent=1 // pred_check
      _
    $region63: #{sma_forward.1} parent=1 // pred_check_branch
      %2790 = sbr.rel (0) target = $region65
    $region64: #{sma_forward.1} parent=1 // pred_region
      _
    $region65: #{sma_forward.1} parent=1 // pred_fallthru
      _
    %2791 = vsyncpa [#allocation3], 1
    %2792 = vsyncpa [#allocation5], 1
    %2793 = vsyncpa [#allocation8], 1
    %2794 = vsyncpa [#allocation11], 1

</llo_original>
